<compile_context>
chip_gen: v6e
topology: v6e:2x2x1
jax: 0.10.0
libtpu: 0.0.40
codegen_flags: <defaults>
</compile_context>

<pallas_src>
import functools

import jax
import jax.numpy as jnp
from jax.experimental import pallas as pl
from jax.experimental.pallas import tpu as pltpu

# ---- sizes (consistent with the forward's -512/-256 slicing) -----------------
D_IN = 576                    # full feature vector length (fc1 input size)
H_UT = 32                     # u_t stand-in hidden ("middle") size
H = 32                        # hidden_size (fc1 out / LSTM hidden)

# packed weight-slab row offsets (all multiples of 8 -> sublane-tile aligned)
W_IN_OFF = 0                  # (576,128) cols: [u_t half A | u_t half B | fc1 | 0]
W_REC_OFF = W_IN_OFF + D_IN   # (128,128) rows 64:96 Wih, rows 96:128 Whh (gates i,f,g,o)
W_U_OFF = W_REC_OFF + 128     # (128,128) u_t logit-diff head (cols 0,1 used)
W_O_OFF = W_U_OFF + 128       # (32,128)  fc3 head (col 2 used)
BIAS_OFF = W_O_OFF + H        # (8,128)   row0 = b_in, row1 = b_gates, row2 = b_head
SLAB_ROWS = BIAS_OFF + 8      # 872


def _round_up(n, m):
    return ((n + m - 1) // m) * m


# --------------------------- kernel ------------------------------------------
def _seq_kernel(t_total_ref, x_ref, ay_ref, slab_ref, state0_ref,
                out_ref, state_ref,
                h_sc, c_sc, hall_sc, gates_sc):
    g = pl.program_id(0)
    tb = x_ref.shape[0]                                  # timesteps per grid step

    @pl.when(g == 0)
    def _init():
        h_sc[...] = state0_ref[:, 0:H]
        c_sc[...] = state0_ref[:, H:2 * H]

    # ---- batched, non-recurrent stage: once per TB timesteps ----------------
    xblk = x_ref[...]                                    # (TB, 576)
    bias = slab_ref[BIAS_OFF:BIAS_OFF + 8, :]            # (8, 128), read once / block
    b_in = bias[0:1, :]
    b_gates = bias[1:2, :]
    b_head = bias[2:3, :]

    # fused u_t(x[:, -512:-256]) / u_t(x[:, -256:]) / fc1(x), shared ReLU:
    # h_big = [h_u_a | h_u_b | z | 0]    (TB, 128)
    h_big = jnp.maximum(
        jnp.dot(xblk, slab_ref[W_IN_OFF:W_IN_OFF + D_IN, :],
                preferred_element_type=jnp.float32) + b_in,
        0.0)

    # u(t): softmax over 2 classes -> prob(class 1) == sigmoid(logit1 - logit0);
    # min over both halves == sigmoid(min(diffs)) since sigmoid is monotone.
    udiff = jnp.dot(h_big, slab_ref[W_U_OFF:W_U_OFF + 128, :],
                    preferred_element_type=jnp.float32) + b_head    # (TB, 128)
    u = jax.nn.sigmoid(jnp.minimum(udiff[:, 0:1], udiff[:, 1:2]))   # (TB, 1)

    # Wih contribution to the LSTM gates (exact: h_big lanes 96:128 are zero).
    gates_sc[...] = jnp.dot(h_big, slab_ref[W_REC_OFF:W_REC_OFF + 128, :],
                            preferred_element_type=jnp.float32) + b_gates

    # ---- minimal serial recurrence: Whh dot + LSTM elementwise only ---------
    w_hh = slab_ref[W_REC_OFF + 3 * H:W_REC_OFF + 4 * H, :]         # (32, 128)
    t_total = t_total_ref[0]
    base = g * tb

    def step(t, carry):
        h_prev, c_prev = carry
        gates = gates_sc[pl.ds(t, 1), :] + jnp.dot(
            h_prev, w_hh, preferred_element_type=jnp.float32)       # (1, 4H)
        sg = jax.nn.sigmoid(gates)           # one EUP pass over the whole vreg
        i_g = sg[:, 0 * H:1 * H]
        f_g = sg[:, 1 * H:2 * H]
        o_g = sg[:, 3 * H:4 * H]
        g_g = jnp.tanh(gates[:, 2 * H:3 * H])
        c_new = f_g * c_prev + i_g * g_g
        h_new = o_g * jnp.tanh(c_new)
        hall_sc[pl.ds(t, 1), :] = h_new
        valid = base + t < t_total           # padded tail steps don't touch carry
        return (jnp.where(valid, h_new, h_prev),
                jnp.where(valid, c_new, c_prev))

    h_fin, c_fin = jax.lax.fori_loop(0, tb, step, (h_sc[...], c_sc[...]))
    h_sc[...] = h_fin
    c_sc[...] = c_fin

    # ---- batched epilogue: fc3 head + y/a/u composition, dense store --------
    head = jnp.dot(hall_sc[...], slab_ref[W_O_OFF:W_O_OFF + H, :],
                   preferred_element_type=jnp.float32) + b_head     # (TB, 128)
    a_raw = jax.nn.sigmoid(head[:, 2:3])                            # (TB, 1)

    ay = ay_ref[...]                                                # (TB, 2)
    a_pre = ay[:, 0:1]
    y_pre = ay[:, 1:2]
    a = u * a_pre + (1.0 - u) * a_raw
    y = a * u + (1.0 - a) * y_pre
    y = jnp.where(u < 0.5, jnp.zeros_like(y), y)   # `if u<0.5: y -= y.data` (value)

    out_ref[...] = jnp.zeros((tb, 128), jnp.float32)
    out_ref[:, 0:1] = y
    out_ref[:, 1:2] = a
    out_ref[:, 2:3] = u

    # final LSTM state only (resident block, flushed once at grid end)
    state_ref[...] = jnp.zeros((1, 128), jnp.float32)
    state_ref[:, 0:H] = h_fin
    state_ref[:, H:2 * H] = c_fin


# --------------------------- wrapper ------------------------------------------
@functools.partial(jax.jit, static_argnames=("tb",))
def first_delay_sequence(x_seq, a_pre_seq, y_pre_seq, slab, h0, c0, *, tb=128):
    """Runs T timesteps of FirstDelayActionPredict_ut_model.forward in one kernel.

    x_seq: (T, D_IN);  a_pre_seq, y_pre_seq: (T,);  slab: pack_params(params);
    h0, c0: (H,) initial LSTM state (zeros == PyTorch `hidden=None`).
    Returns ((y, a, u) each (T,), (h_T, c_T)).
    """
    T = x_seq.shape[0]
    tb_eff = _round_up(min(int(tb), _round_up(T, 8)), 8)
    t_pad = _round_up(T, tb_eff)
    n_blocks = t_pad // tb_eff

    x_p = x_seq.astype(jnp.float32)
    ay = jnp.stack([a_pre_seq.astype(jnp.float32),
                    y_pre_seq.astype(jnp.float32)], axis=-1)         # (T, 2)
    if t_pad != T:
        x_p = jnp.pad(x_p, ((0, t_pad - T), (0, 0)))
        ay = jnp.pad(ay, ((0, t_pad - T), (0, 0)))

    state0 = jnp.zeros((1, 128), jnp.float32)
    state0 = state0.at[0, 0:H].set(h0.astype(jnp.float32))
    state0 = state0.at[0, H:2 * H].set(c0.astype(jnp.float32))

    t_total = jnp.array([T], jnp.int32)                              # SMEM scalar

    out, state_out = pl.pallas_call(
        _seq_kernel,
        out_shape=(jax.ShapeDtypeStruct((t_pad, 128), jnp.float32),
                   jax.ShapeDtypeStruct((1, 128), jnp.float32)),
        grid_spec=pltpu.PrefetchScalarGridSpec(
            num_scalar_prefetch=1,
            grid=(n_blocks,),
            in_specs=[
                pl.BlockSpec((tb_eff, D_IN), lambda g, n: (g, 0)),   # x block
                pl.BlockSpec((tb_eff, 2), lambda g, n: (g, 0)),      # [a_pre, y_pre]
                pl.BlockSpec((SLAB_ROWS, 128), lambda g, n: (0, 0)), # weights (resident)
                pl.BlockSpec((1, 128), lambda g, n: (0, 0)),         # initial LSTM state
            ],
            out_specs=[
                pl.BlockSpec((tb_eff, 128), lambda g, n: (g, 0)),    # y/a/u per step
                pl.BlockSpec((1, 128), lambda g, n: (0, 0)),         # final h/c only
            ],
            scratch_shapes=[
                pltpu.VMEM((1, H), jnp.float32),            # h carry
                pltpu.VMEM((1, H), jnp.float32),            # c carry
                pltpu.VMEM((tb_eff, H), jnp.float32),       # h_new per step (for head)
                pltpu.VMEM((tb_eff, 4 * H), jnp.float32),   # Wih gate contributions
            ],
        ),
        compiler_params=pltpu.CompilerParams(
            dimension_semantics=("arbitrary",)),            # sequential recurrence
    )(t_total, x_p, ay, slab, state0)

    y_seq = out[:T, 0]
    a_seq = out[:T, 1]
    u_seq = out[:T, 2]
    h_fin = state_out[0, 0:H]
    c_fin = state_out[0, H:2 * H]
    return (y_seq, a_seq, u_seq), (h_fin, c_fin)


# --------------------------- parameter packing ---------------------------------
def init_params(key):
    keys = jax.random.split(key, 12)

    def init(k, shape, scale=0.05):
        return (scale * jax.random.normal(k, shape)).astype(jnp.float32)

    return {
        # synthetic u_t_model: 256 -> H_UT (ReLU) -> 2
        'wu1': init(keys[0], (256, H_UT)), 'bu1': init(keys[1], (H_UT,)),
        'wu2': init(keys[2], (H_UT, 2)),   'bu2': init(keys[3], (2,)),
        # fc1: D_IN -> H   (stored transposed vs. PyTorch: (in, out))
        'w1': init(keys[4], (D_IN, H)),    'b1': init(keys[5], (H,)),
        # LSTM (input H, hidden H), weights stored as (in, 4H), gates (i,f,g,o)
        'wih': init(keys[6], (H, 4 * H)),  'whh': init(keys[7], (H, 4 * H)),
        'bih': init(keys[8], (4 * H,)),    'bhh': init(keys[9], (4 * H,)),
        # fc3: H -> 1
        'w3': init(keys[10], (H, 1)),      'b3': init(keys[11], (1,)),
    }


def pack_params(p):
    """Pack all weights into one (SLAB_ROWS, 128) lane-aligned f32 slab."""
    f32 = jnp.float32

    w_in = jnp.zeros((D_IN, 128), f32)
    w_in = w_in.at[D_IN - 512:D_IN - 256, 0:H_UT].set(p['wu1'])          # u_t half A
    w_in = w_in.at[D_IN - 256:D_IN, H_UT:2 * H_UT].set(p['wu1'])         # u_t half B
    w_in = w_in.at[0:D_IN, 2 * H_UT:2 * H_UT + H].set(p['w1'])           # fc1

    w_rec = jnp.zeros((128, 128), f32)                    # input = [hua|hub|z|h_prev]
    w_rec = w_rec.at[2 * H_UT:2 * H_UT + H, :].set(p['wih'])
    w_rec = w_rec.at[3 * H:4 * H, :].set(p['whh'])

    wu2d = p['wu2'][:, 1] - p['wu2'][:, 0]                # softmax -> sigmoid diff
    w_u = jnp.zeros((128, 128), f32)
    w_u = w_u.at[0:H_UT, 0].set(wu2d)
    w_u = w_u.at[H_UT:2 * H_UT, 1].set(wu2d)

    w_o = jnp.zeros((H, 128), f32)
    w_o = w_o.at[:, 2].set(p['w3'][:, 0])

    bias = jnp.zeros((8, 128), f32)
    bias = bias.at[0, 0:H_UT].set(p['bu1'])
    bias = bias.at[0, H_UT:2 * H_UT].set(p['bu1'])
    bias = bias.at[0, 2 * H_UT:2 * H_UT + H].set(p['b1'])
    bias = bias.at[1, :].set(p['bih'] + p['bhh'])
    bu2d = p['bu2'][1] - p['bu2'][0]
    bias = bias.at[2, 0].set(bu2d)
    bias = bias.at[2, 1].set(bu2d)
    bias = bias.at[2, 2].set(p['b3'][0])

    slab = jnp.concatenate([w_in, w_rec, w_u, w_o, bias], axis=0)        # (872, 128)
    assert slab.shape == (SLAB_ROWS, 128)
    # Packing invariant the fused gates_in dot relies on: h_big lanes 96:128 must
    # be exactly zero, i.e. W_in cols 96:128 and b_in lanes 96:128 are zero.
    assert bool(jnp.all(w_in[:, 3 * H:] == 0.0))
    assert bool(jnp.all(bias[0, 3 * H:] == 0.0))
    return slab


# --------------------------- pure-JAX reference --------------------------------
def reference_forward(params, x_seq, a_pre_seq, y_pre_seq):
    dotf = functools.partial(jnp.dot, precision=jax.lax.Precision.HIGHEST)

    def step(carry, inp):
        h_prev, c_prev = carry
        x, a_pre, y_pre = inp
        x = x[None, :]
        xa = x[:, D_IN - 512:D_IN - 256]
        xb = x[:, D_IN - 256:]
        hua = jax.nn.relu(dotf(xa, params['wu1']) + params['bu1'])
        hub = jax.nn.relu(dotf(xb, params['wu1']) + params['bu1'])
        la = dotf(hua, params['wu2']) + params['bu2']
        lb = dotf(hub, params['wu2']) + params['bu2']
        pa = jax.nn.softmax(la, axis=-1)[:, 1]
        pb = jax.nn.softmax(lb, axis=-1)[:, 1]
        u = jnp.minimum(pa, pb)[0]
        z = jax.nn.relu(dotf(x, params['w1']) + params['b1'])
        gates = (dotf(z, params['wih']) + params['bih']
                 + dotf(h_prev, params['whh']) + params['bhh'])
        i_g = jax.nn.sigmoid(gates[:, 0 * H:1 * H])
        f_g = jax.nn.sigmoid(gates[:, 1 * H:2 * H])
        g_g = jnp.tanh(gates[:, 2 * H:3 * H])
        o_g = jax.nn.sigmoid(gates[:, 3 * H:4 * H])
        c_new = f_g * c_prev + i_g * g_g
        h_new = o_g * jnp.tanh(c_new)
        a_raw = jax.nn.sigmoid(dotf(h_new, params['w3']) + params['b3'])[0, 0]
        a = u * a_pre + (1.0 - u) * a_raw
        y = a * u + (1.0 - a) * y_pre
        y = jnp.where(u < 0.5, 0.0, y)
        return (h_new, c_new), (y, a, u)

    carry0 = (jnp.zeros((1, H), jnp.float32), jnp.zeros((1, H), jnp.float32))
    (h_f, c_f), (ys, as_, us) = jax.lax.scan(
        step, carry0, (x_seq, a_pre_seq, y_pre_seq))
    return (ys, as_, us), (h_f[0], c_f[0])


# --------------------------- demo / self-check ---------------------------------
if __name__ == "__main__":
    key = jax.random.PRNGKey(0)
    pkey, xkey, akey, ykey = jax.random.split(key, 4)

    params = init_params(pkey)
    slab = pack_params(params)

    # small demo: T=37 with tb=16 exercises multi-block carry (grid=3) + tail masking
    T = 37
    x_seq = jax.random.normal(xkey, (T, D_IN), dtype=jnp.float32)
    a_pre_seq = jax.random.uniform(akey, (T,), dtype=jnp.float32)
    y_pre_seq = jax.random.uniform(ykey, (T,), dtype=jnp.float32)
    h0 = jnp.zeros((H,), jnp.float32)
    c0 = jnp.zeros((H,), jnp.float32)

    (y, a, u), (hT, cT) = first_delay_sequence(
        x_seq, a_pre_seq, y_pre_seq, slab, h0, c0, tb=16)
    jax.block_until_ready((y, a, u, hT, cT))

    # numerical sanity check against a pure-JAX reference of the same math
    (y_r, a_r, u_r), (hT_r, cT_r) = reference_forward(
        params, x_seq, a_pre_seq, y_pre_seq)
    tol = 1e-3
    ok_u = jnp.max(jnp.abs(u - u_r)) < tol
    ok_a = jnp.max(jnp.abs(a - a_r)) < tol
    safe = jnp.abs(u_r - 0.5) > 1e-3          # away from the `u < 0.5` branch boundary
    ok_y = jnp.max(jnp.where(safe, jnp.abs(y - y_r), 0.0)) < tol
    ok_h = jnp.max(jnp.abs(hT - hT_r)) < tol
    ok_c = jnp.max(jnp.abs(cT - cT_r)) < tol
    if not (bool(ok_u) and bool(ok_a) and bool(ok_y) and bool(ok_h) and bool(ok_c)):
        raise SystemExit("numerical mismatch vs pure-JAX reference")

    print("KERNEL_OK")
</pallas_src>

<mosaic_0001>
module attributes {stable_mosaic.version = 11 : i64} {
  func.func @_seq_kernel(%arg0: i32, %arg1: memref<1xi32, #tpu.memory_space<smem>>, %arg2: memref<16x576xf32, #tpu.memory_space<vmem>>, %arg3: memref<16x2xf32, #tpu.memory_space<vmem>>, %arg4: memref<872x128xf32, #tpu.memory_space<vmem>>, %arg5: memref<1x128xf32, #tpu.memory_space<vmem>>, %arg6: memref<16x128xf32, #tpu.memory_space<vmem>>, %arg7: memref<1x128xf32, #tpu.memory_space<vmem>>, %arg8: memref<1x32xf32, #tpu.memory_space<vmem>>, %arg9: memref<1x32xf32, #tpu.memory_space<vmem>>, %arg10: memref<16x32xf32, #tpu.memory_space<vmem>>, %arg11: memref<16x128xf32, #tpu.memory_space<vmem>>) attributes {dimension_semantics = [#tpu.dimension_semantics<arbitrary>], iteration_bounds = array<i64: 3>, scalar_prefetch = 1 : i64, scratch_operands = 4 : i64, tpu.core_type = #tpu.core_type<tc>, window_params = [{transform_indices = @transform_0, window_bounds = array<i64: 16, 576>}, {transform_indices = @transform_1, window_bounds = array<i64: 16, 2>}, {pipeline_mode = #tpu.pipeline_mode<synchronous>, transform_indices = @transform_2, window_bounds = array<i64: 872, 128>}, {pipeline_mode = #tpu.pipeline_mode<synchronous>, transform_indices = @transform_3, window_bounds = array<i64: 1, 128>}, {transform_indices = @transform_4, window_bounds = array<i64: 16, 128>}, {pipeline_mode = #tpu.pipeline_mode<synchronous>, transform_indices = @transform_5, window_bounds = array<i64: 1, 128>}]} {
    %c0_i32 = arith.constant 0 : i32
    %0 = arith.cmpi eq, %arg0, %c0_i32 : i32
    %1 = arith.extui %0 : i1 to i32
    %c0_i32_0 = arith.constant 0 : i32
    %2 = arith.cmpi ne, %1, %c0_i32_0 : i32
    scf.if %2 {
      %c0_50 = arith.constant 0 : index
      %c0_51 = arith.constant 0 : index
      %77 = vector.load %arg5[%c0_50, %c0_51] : memref<1x128xf32, #tpu.memory_space<vmem>>, vector<1x32xf32>
      %c0_52 = arith.constant 0 : index
      %c0_53 = arith.constant 0 : index
      %78 = vector.load %arg8[%c0_52, %c0_53] : memref<1x32xf32, #tpu.memory_space<vmem>>, vector<1x32xf32>
      tpu.vector_store %arg8[%c0_52, %c0_53], %77 {strides = array<i32>} : memref<1x32xf32, #tpu.memory_space<vmem>>, vector<1x32xf32>,
      %c0_54 = arith.constant 0 : index
      %c32_55 = arith.constant 32 : index
      %79 = vector.load %arg5[%c0_54, %c32_55] : memref<1x128xf32, #tpu.memory_space<vmem>>, vector<1x32xf32>
      %c0_56 = arith.constant 0 : index
      %c0_57 = arith.constant 0 : index
      %80 = vector.load %arg9[%c0_56, %c0_57] : memref<1x32xf32, #tpu.memory_space<vmem>>, vector<1x32xf32>
      tpu.vector_store %arg9[%c0_56, %c0_57], %79 {strides = array<i32>} : memref<1x32xf32, #tpu.memory_space<vmem>>, vector<1x32xf32>,
    } else {
    }
    %c0 = arith.constant 0 : index
    %c0_1 = arith.constant 0 : index
    %3 = vector.load %arg2[%c0, %c0_1] : memref<16x576xf32, #tpu.memory_space<vmem>>, vector<16x576xf32>
    %c864 = arith.constant 864 : index
    %c0_2 = arith.constant 0 : index
    %4 = vector.load %arg4[%c864, %c0_2] : memref<872x128xf32, #tpu.memory_space<vmem>>, vector<8x128xf32>
    %5 = vector.extract_strided_slice %4 {offsets = [0, 0], sizes = [1, 128], strides = [1, 1]} : vector<8x128xf32> to vector<1x128xf32>
    %6 = vector.extract_strided_slice %4 {offsets = [1, 0], sizes = [1, 128], strides = [1, 1]} : vector<8x128xf32> to vector<1x128xf32>
    %7 = vector.extract_strided_slice %4 {offsets = [2, 0], sizes = [1, 128], strides = [1, 1]} : vector<8x128xf32> to vector<1x128xf32>
    %c0_3 = arith.constant 0 : index
    %c0_4 = arith.constant 0 : index
    %8 = vector.load %arg4[%c0_3, %c0_4] : memref<872x128xf32, #tpu.memory_space<vmem>>, vector<576x128xf32>
    %cst = arith.constant dense<0.000000e+00> : vector<16x128xf32>
    %9 = tpu.matmul %3, %8, %cst {dimension_numbers = #tpu.dot_dimension_numbers<[1], [0], [0], [1], [0, 0, 1, 1], [], []>} : vector<16x576xf32>, vector<576x128xf32>, vector<16x128xf32> -> vector<16x128xf32>
    %10 = vector.broadcast %5 : vector<1x128xf32> to vector<16x128xf32>
    %11 = arith.addf %9, %10 : vector<16x128xf32>
    %cst_5 = arith.constant 0.000000e+00 : f32
    %12 = vector.broadcast %cst_5 : f32 to vector<16x128xf32>
    %13 = arith.maximumf %11, %12 : vector<16x128xf32>
    %c704 = arith.constant 704 : index
    %c0_6 = arith.constant 0 : index
    %14 = vector.load %arg4[%c704, %c0_6] : memref<872x128xf32, #tpu.memory_space<vmem>>, vector<128x128xf32>
    %cst_7 = arith.constant dense<0.000000e+00> : vector<16x128xf32>
    %15 = tpu.matmul %13, %14, %cst_7 {dimension_numbers = #tpu.dot_dimension_numbers<[1], [0], [0], [1], [0, 0, 1, 1], [], []>} : vector<16x128xf32>, vector<128x128xf32>, vector<16x128xf32> -> vector<16x128xf32>
    %16 = vector.broadcast %7 : vector<1x128xf32> to vector<16x128xf32>
    %17 = arith.addf %15, %16 : vector<16x128xf32>
    %18 = vector.extract_strided_slice %17 {offsets = [0, 0], sizes = [16, 1], strides = [1, 1]} : vector<16x128xf32> to vector<16x1xf32>
    %19 = vector.extract_strided_slice %17 {offsets = [0, 1], sizes = [16, 1], strides = [1, 1]} : vector<16x128xf32> to vector<16x1xf32>
    %20 = arith.minimumf %18, %19 : vector<16x1xf32>
    %21 = arith.negf %20 : vector<16x1xf32>
    %22 = math.exp %21 : vector<16x1xf32>
    %cst_8 = arith.constant 1.000000e+00 : f32
    %23 = vector.broadcast %cst_8 : f32 to vector<16x1xf32>
    %24 = arith.addf %23, %22 : vector<16x1xf32>
    %25 = arith.divf %23, %24 : vector<16x1xf32>
    %c576 = arith.constant 576 : index
    %c0_9 = arith.constant 0 : index
    %26 = vector.load %arg4[%c576, %c0_9] : memref<872x128xf32, #tpu.memory_space<vmem>>, vector<128x128xf32>
    %cst_10 = arith.constant dense<0.000000e+00> : vector<16x128xf32>
    %27 = tpu.matmul %13, %26, %cst_10 {dimension_numbers = #tpu.dot_dimension_numbers<[1], [0], [0], [1], [0, 0, 1, 1], [], []>} : vector<16x128xf32>, vector<128x128xf32>, vector<16x128xf32> -> vector<16x128xf32>
    %28 = vector.broadcast %6 : vector<1x128xf32> to vector<16x128xf32>
    %29 = arith.addf %27, %28 : vector<16x128xf32>
    %c0_11 = arith.constant 0 : index
    %c0_12 = arith.constant 0 : index
    %30 = vector.load %arg11[%c0_11, %c0_12] : memref<16x128xf32, #tpu.memory_space<vmem>>, vector<16x128xf32>
    tpu.vector_store %arg11[%c0_11, %c0_12], %29 {strides = array<i32>} : memref<16x128xf32, #tpu.memory_space<vmem>>, vector<16x128xf32>,
    %c672 = arith.constant 672 : index
    %c0_13 = arith.constant 0 : index
    %31 = vector.load %arg4[%c672, %c0_13] : memref<872x128xf32, #tpu.memory_space<vmem>>, vector<32x128xf32>
    %c0_14 = arith.constant 0 : index
    %32 = memref.load %arg1[%c0_14] : memref<1xi32, #tpu.memory_space<smem>>
    %c16_i32 = arith.constant 16 : i32
    %33 = arith.muli %arg0, %c16_i32 : i32
    %c0_15 = arith.constant 0 : index
    %c0_16 = arith.constant 0 : index
    %34 = vector.load %arg8[%c0_15, %c0_16] : memref<1x32xf32, #tpu.memory_space<vmem>>, vector<1x32xf32>
    %c0_17 = arith.constant 0 : index
    %c0_18 = arith.constant 0 : index
    %35 = vector.load %arg9[%c0_17, %c0_18] : memref<1x32xf32, #tpu.memory_space<vmem>>, vector<1x32xf32>
    %c0_i32_19 = arith.constant 0 : i32
    %c16_i32_20 = arith.constant 16 : i32
    %36 = arith.addi %c0_i32_19, %c16_i32_20 : i32
    %c1_i32 = arith.constant 1 : i32
    %37:2 = scf.for %arg12 = %c0_i32_19 to %36 step %c1_i32 iter_args(%arg13 = %34, %arg14 = %35) -> (vector<1x32xf32>, vector<1x32xf32>)  : i32 {
      %77 = arith.index_cast %arg12 : i32 to index
      %c0_50 = arith.constant 0 : index
      %78 = vector.load %arg11[%77, %c0_50] : memref<16x128xf32, #tpu.memory_space<vmem>>, vector<1x128xf32>
      %cst_51 = arith.constant dense<0.000000e+00> : vector<1x128xf32>
      %79 = tpu.matmul %arg13, %31, %cst_51 {dimension_numbers = #tpu.dot_dimension_numbers<[1], [0], [0], [1], [0, 0, 1, 1], [], []>} : vector<1x32xf32>, vector<32x128xf32>, vector<1x128xf32> -> vector<1x128xf32>
      %80 = arith.addf %78, %79 : vector<1x128xf32>
      %81 = arith.negf %80 : vector<1x128xf32>
      %82 = math.exp %81 : vector<1x128xf32>
      %cst_52 = arith.constant 1.000000e+00 : f32
      %83 = vector.broadcast %cst_52 : f32 to vector<1x128xf32>
      %84 = arith.addf %83, %82 : vector<1x128xf32>
      %85 = arith.divf %83, %84 : vector<1x128xf32>
      %86 = vector.extract_strided_slice %85 {offsets = [0, 0], sizes = [1, 32], strides = [1, 1]} : vector<1x128xf32> to vector<1x32xf32>
      %87 = vector.extract_strided_slice %85 {offsets = [0, 32], sizes = [1, 32], strides = [1, 1]} : vector<1x128xf32> to vector<1x32xf32>
      %88 = vector.extract_strided_slice %85 {offsets = [0, 96], sizes = [1, 32], strides = [1, 1]} : vector<1x128xf32> to vector<1x32xf32>
      %89 = vector.extract_strided_slice %80 {offsets = [0, 64], sizes = [1, 32], strides = [1, 1]} : vector<1x128xf32> to vector<1x32xf32>
      %90 = math.tanh %89 : vector<1x32xf32>
      %91 = arith.mulf %87, %arg14 : vector<1x32xf32>
      %92 = arith.mulf %86, %90 : vector<1x32xf32>
      %93 = arith.addf %91, %92 : vector<1x32xf32>
      %94 = math.tanh %93 : vector<1x32xf32>
      %95 = arith.mulf %88, %94 : vector<1x32xf32>
      %96 = arith.index_cast %arg12 : i32 to index
      %c0_53 = arith.constant 0 : index
      %97 = vector.load %arg10[%96, %c0_53] : memref<16x32xf32, #tpu.memory_space<vmem>>, vector<1x32xf32>
      tpu.vector_store %arg10[%96, %c0_53], %95 {strides = array<i32>} : memref<16x32xf32, #tpu.memory_space<vmem>>, vector<1x32xf32>,
      %98 = arith.addi %33, %arg12 : i32
      %99 = arith.cmpi slt, %98, %32 : i32
      %100 = arith.select %99, %95, %arg13 : vector<1x32xf32>
      %101 = arith.select %99, %93, %arg14 : vector<1x32xf32>
      scf.yield %100, %101 : vector<1x32xf32>, vector<1x32xf32>
    }
    %c16_i32_21 = arith.constant 16 : i32
    %c0_22 = arith.constant 0 : index
    %c0_23 = arith.constant 0 : index
    %38 = vector.load %arg8[%c0_22, %c0_23] : memref<1x32xf32, #tpu.memory_space<vmem>>, vector<1x32xf32>
    tpu.vector_store %arg8[%c0_22, %c0_23], %37#0 {strides = array<i32>} : memref<1x32xf32, #tpu.memory_space<vmem>>, vector<1x32xf32>,
    %c0_24 = arith.constant 0 : index
    %c0_25 = arith.constant 0 : index
    %39 = vector.load %arg9[%c0_24, %c0_25] : memref<1x32xf32, #tpu.memory_space<vmem>>, vector<1x32xf32>
    tpu.vector_store %arg9[%c0_24, %c0_25], %37#1 {strides = array<i32>} : memref<1x32xf32, #tpu.memory_space<vmem>>, vector<1x32xf32>,
    %c0_26 = arith.constant 0 : index
    %c0_27 = arith.constant 0 : index
    %40 = vector.load %arg10[%c0_26, %c0_27] : memref<16x32xf32, #tpu.memory_space<vmem>>, vector<16x32xf32>
    %c832 = arith.constant 832 : index
    %c0_28 = arith.constant 0 : index
    %41 = vector.load %arg4[%c832, %c0_28] : memref<872x128xf32, #tpu.memory_space<vmem>>, vector<32x128xf32>
    %cst_29 = arith.constant dense<0.000000e+00> : vector<16x128xf32>
    %42 = tpu.matmul %40, %41, %cst_29 {dimension_numbers = #tpu.dot_dimension_numbers<[1], [0], [0], [1], [0, 0, 1, 1], [], []>} : vector<16x32xf32>, vector<32x128xf32>, vector<16x128xf32> -> vector<16x128xf32>
    %43 = vector.broadcast %7 : vector<1x128xf32> to vector<16x128xf32>
    %44 = arith.addf %42, %43 : vector<16x128xf32>
    %45 = vector.extract_strided_slice %44 {offsets = [0, 2], sizes = [16, 1], strides = [1, 1]} : vector<16x128xf32> to vector<16x1xf32>
    %46 = arith.negf %45 : vector<16x1xf32>
    %47 = math.exp %46 : vector<16x1xf32>
    %cst_30 = arith.constant 1.000000e+00 : f32
    %48 = vector.broadcast %cst_30 : f32 to vector<16x1xf32>
    %49 = arith.addf %48, %47 : vector<16x1xf32>
    %50 = arith.divf %48, %49 : vector<16x1xf32>
    %c0_31 = arith.constant 0 : index
    %c0_32 = arith.constant 0 : index
    %51 = vector.load %arg3[%c0_31, %c0_32] : memref<16x2xf32, #tpu.memory_space<vmem>>, vector<16x2xf32>
    %52 = vector.extract_strided_slice %51 {offsets = [0, 0], sizes = [16, 1], strides = [1, 1]} : vector<16x2xf32> to vector<16x1xf32>
    %53 = vector.extract_strided_slice %51 {offsets = [0, 1], sizes = [16, 1], strides = [1, 1]} : vector<16x2xf32> to vector<16x1xf32>
    %54 = arith.mulf %25, %52 : vector<16x1xf32>
    %cst_33 = arith.constant 1.000000e+00 : f32
    %55 = vector.broadcast %cst_33 : f32 to vector<16x1xf32>
    %56 = arith.subf %55, %25 : vector<16x1xf32>
    %57 = arith.mulf %56, %50 : vector<16x1xf32>
    %58 = arith.addf %54, %57 : vector<16x1xf32>
    %59 = arith.mulf %58, %25 : vector<16x1xf32>
    %cst_34 = arith.constant 1.000000e+00 : f32
    %60 = vector.broadcast %cst_34 : f32 to vector<16x1xf32>
    %61 = arith.subf %60, %58 : vector<16x1xf32>
    %62 = arith.mulf %61, %53 : vector<16x1xf32>
    %63 = arith.addf %59, %62 : vector<16x1xf32>
    %cst_35 = arith.constant 5.000000e-01 : f32
    %64 = vector.broadcast %cst_35 : f32 to vector<16x1xf32>
    %65 = arith.cmpf olt, %25, %64 : vector<16x1xf32>
    %cst_36 = arith.constant 0.000000e+00 : f32
    %66 = vector.broadcast %cst_36 : f32 to vector<16x1xf32>
    %67 = arith.select %65, %66, %63 : vector<16x1xi1>, vector<16x1xf32>
    %cst_37 = arith.constant 0.000000e+00 : f32
    %68 = vector.broadcast %cst_37 : f32 to vector<16x128xf32>
    %c0_38 = arith.constant 0 : index
    %c0_39 = arith.constant 0 : index
    %69 = vector.load %arg6[%c0_38, %c0_39] : memref<16x128xf32, #tpu.memory_space<vmem>>, vector<16x128xf32>
    tpu.vector_store %arg6[%c0_38, %c0_39], %68 {strides = array<i32>} : memref<16x128xf32, #tpu.memory_space<vmem>>, vector<16x128xf32>,
    %c0_40 = arith.constant 0 : index
    %c0_41 = arith.constant 0 : index
    %70 = vector.load %arg6[%c0_40, %c0_41] : memref<16x128xf32, #tpu.memory_space<vmem>>, vector<16x1xf32>
    tpu.vector_store %arg6[%c0_40, %c0_41], %67 {strides = array<i32>} : memref<16x128xf32, #tpu.memory_space<vmem>>, vector<16x1xf32>,
    %c0_42 = arith.constant 0 : index
    %c1 = arith.constant 1 : index
    %71 = vector.load %arg6[%c0_42, %c1] : memref<16x128xf32, #tpu.memory_space<vmem>>, vector<16x1xf32>
    tpu.vector_store %arg6[%c0_42, %c1], %58 {strides = array<i32>} : memref<16x128xf32, #tpu.memory_space<vmem>>, vector<16x1xf32>,
    %c0_43 = arith.constant 0 : index
    %c2 = arith.constant 2 : index
    %72 = vector.load %arg6[%c0_43, %c2] : memref<16x128xf32, #tpu.memory_space<vmem>>, vector<16x1xf32>
    tpu.vector_store %arg6[%c0_43, %c2], %25 {strides = array<i32>} : memref<16x128xf32, #tpu.memory_space<vmem>>, vector<16x1xf32>,
    %cst_44 = arith.constant 0.000000e+00 : f32
    %73 = vector.broadcast %cst_44 : f32 to vector<1x128xf32>
    %c0_45 = arith.constant 0 : index
    %c0_46 = arith.constant 0 : index
    %74 = vector.load %arg7[%c0_45, %c0_46] : memref<1x128xf32, #tpu.memory_space<vmem>>, vector<1x128xf32>
    tpu.vector_store %arg7[%c0_45, %c0_46], %73 {strides = array<i32>} : memref<1x128xf32, #tpu.memory_space<vmem>>, vector<1x128xf32>,
    %c0_47 = arith.constant 0 : index
    %c0_48 = arith.constant 0 : index
    %75 = vector.load %arg7[%c0_47, %c0_48] : memref<1x128xf32, #tpu.memory_space<vmem>>, vector<1x32xf32>
    tpu.vector_store %arg7[%c0_47, %c0_48], %37#0 {strides = array<i32>} : memref<1x128xf32, #tpu.memory_space<vmem>>, vector<1x32xf32>,
    %c0_49 = arith.constant 0 : index
    %c32 = arith.constant 32 : index
    %76 = vector.load %arg7[%c0_49, %c32] : memref<1x128xf32, #tpu.memory_space<vmem>>, vector<1x32xf32>
    tpu.vector_store %arg7[%c0_49, %c32], %37#1 {strides = array<i32>} : memref<1x128xf32, #tpu.memory_space<vmem>>, vector<1x32xf32>,
    return
  }
  func.func @transform_0(%arg0: i32, %arg1: memref<1xi32, #tpu.memory_space<smem>>) -> (i32, i32) {
    %c0_i32 = arith.constant 0 : i32
    %c0_i32_0 = arith.constant 0 : i32
    return %arg0, %c0_i32 : i32, i32
  }
  func.func @transform_1(%arg0: i32, %arg1: memref<1xi32, #tpu.memory_space<smem>>) -> (i32, i32) {
    %c0_i32 = arith.constant 0 : i32
    %c0_i32_0 = arith.constant 0 : i32
    return %arg0, %c0_i32 : i32, i32
  }
  func.func @transform_2(%arg0: i32, %arg1: memref<1xi32, #tpu.memory_space<smem>>) -> (i32, i32) {
    %c0_i32 = arith.constant 0 : i32
    %c0_i32_0 = arith.constant 0 : i32
    %c0_i32_1 = arith.constant 0 : i32
    return %c0_i32, %c0_i32_0 : i32, i32
  }
  func.func @transform_3(%arg0: i32, %arg1: memref<1xi32, #tpu.memory_space<smem>>) -> (i32, i32) {
    %c0_i32 = arith.constant 0 : i32
    %c0_i32_0 = arith.constant 0 : i32
    %c0_i32_1 = arith.constant 0 : i32
    return %c0_i32, %c0_i32_0 : i32, i32
  }
  func.func @transform_4(%arg0: i32, %arg1: memref<1xi32, #tpu.memory_space<smem>>) -> (i32, i32) {
    %c0_i32 = arith.constant 0 : i32
    %c0_i32_0 = arith.constant 0 : i32
    return %arg0, %c0_i32 : i32, i32
  }
  func.func @transform_5(%arg0: i32, %arg1: memref<1xi32, #tpu.memory_space<smem>>) -> (i32, i32) {
    %c0_i32 = arith.constant 0 : i32
    %c0_i32_0 = arith.constant 0 : i32
    %c0_i32_1 = arith.constant 0 : i32
    return %c0_i32, %c0_i32_0 : i32, i32
  }
}

</mosaic_0001>

<llo_original>
// kernel: first_delay_sequence.1
$region0: #{first_delay_sequence.1}
  #allocation0 [shape = 'u32[]', space=smem, size = 0x4, offset = 0x4, fixed_abs, tag = 'smem constant byte address 0x4 - core index']
  #allocation1 [shape = 'u32[144,128]{1,0:T(1,128)}', space=vmem, size = 0x12000, scoped, tag = 'internal scratch']
  #allocation2 [shape = 'f32[1,32]{1,0:T(1,128)}', space=vmem, size = 0x200, scoped, tag = 'scratch operand']
  #allocation3 [shape = 'f32[1,32]{1,0:T(1,128)}', space=vmem, size = 0x200, scoped, tag = 'scratch operand']
  #allocation4 [shape = 'f32[16,32]{1,0:T(8,128)}', space=vmem, size = 0x2000, scoped, tag = 'scratch operand']
  #allocation5 [shape = 'f32[16,128]{1,0:T(8,128)}', space=vmem, size = 0x2000, scoped, tag = 'scratch operand']
  #allocation6 [shape = 's32[1]{0}', space=sflag, size = 0x4, scoped, tag = 'scoped memory for first_delay_sequence.1']
  #allocation7 [shape = 's32[1]{0:T(128)S(6)}', space=smem, size = 0x200, scoped, tag = 'prefetched SMEM operand 0']
  %s0 = inlined_call_operand.<no memory space> [shape: s32[1], index: 0, kind: input, shape index: {}]
  %s1 = inlined_call_operand.vmem [shape: f32[48,576], index: 1, kind: input, shape index: {}]
  %s2 = inlined_call_operand.vmem [shape: f32[48,2], index: 2, kind: input, shape index: {}]
  %s3 = inlined_call_operand.hbm [shape: f32[872,128], index: 3, kind: input, shape index: {}]
  %s4 = inlined_call_operand.vmem [shape: f32[1,128], index: 4, kind: input, shape index: {}]
  %s5 = inlined_call_operand.vmem [shape: f32[48,128], index: 5, kind: output, shape index: {0}]
  %s6 = inlined_call_operand.vmem [shape: f32[1,128], index: 6, kind: output, shape index: {1}]
  %7 = xla_tuple %s5, %s6
  %s8 = sld [smem:[#allocation0]]
  $region72: #{first_delay_sequence.1} parent=0
    _
  %s10 = ssub.s32 1, %s8
  %s11 = scalar_select 0, %s10, %s8
  %12 = sst [smem:[#allocation7]] %s0
  $region1: #{first_delay_sequence.1} parent=0
    #allocation8 [shape = 'u8[446464]{0}', space=vmem, size = 0x6d000, scoped, tag = 'input window, operand 3, single buffered']
    #allocation9 [shape = 's32[2]{0}', space=sflag, size = 0x8, scoped, tag = 'scoped memory for first_delay_sequence.1']
    %13 = vsyncpa [#allocation9], 0
    loop: start=0, step=1, limit=5
    $region2: #{first_delay_sequence.1} parent=1 // loop_pre_header
      _
    $region3: #{first_delay_sequence.1} parent=1 // loop_header
      %s15 = sphi 0, %s19
      %p16 = scmp.ge.s32.totalorder %s15, 5
      %s25 = sphi 0, %s27
      %s28 = sphi 0, %s25
      %s29 = sphi 0, %s28
      %s45 = sphi 0, %s29
      %s51 = sphi 0, %s53
      %s54 = sphi 0, %s51
      %s55 = sphi 0, %s54
      %s71 = sphi 0, %s55
      %s75 = sphi 0, %s75
      %s77 = sphi 0, %s75
      %s78 = sphi 0, %s77
      %s92 = sphi 0, %s78
      %s96 = sphi 0, %s96
      %s98 = sphi 0, %s96
      %s99 = sphi 0, %s98
      %s113 = sphi 0, %s99
      %s119 = sphi 0, %s121
      %s122 = sphi 0, %s119
      %s123 = sphi 0, %s122
      %s139 = sphi 0, %s123
      %s143 = sphi 0, %s143
      %s145 = sphi 0, %s143
      %s146 = sphi 0, %s145
      %s160 = sphi 0, %s146
    $region4: #{first_delay_sequence.1} parent=1 // loop_header_branch
      %18 = sbr.rel (%p16) target = $region8
    $region5: #{first_delay_sequence.1} parent=1 // loop_body
      %s20 = ssub.s32 %s15, 1
      %s21 = ssub.s32 %s15, 2
      %s22 = sadd.s32 %s15, 1
      %s23 = ssub.s32 %s15, %s22
      %p24 = scmp.eq.s32.totalorder %s23, 0
      %s26 = sadd.s32 %s25, 1
      %s27 = scalar_select %p24, %s25, %s26
      %p30 = pneg %p24
      %p31 = scmp.eq.s32.totalorder %s15, 2
      %p32 = por %p30, %p31
      %p33 = scmp.ne.s32.totalorder %s25, %s28
      %p34 = scmp.eq.s32.totalorder %s15, 0
      %p35 = por %p33, %p34
      %p36 = scmp.ne.s32.totalorder %s25, %s28
      %p37 = scmp.eq.s32.totalorder %s20, 2
      %p38 = por %p36, %p37
      %p39 = scmp.ne.s32.totalorder %s28, %s29
      %p40 = scmp.eq.s32.totalorder %s20, 0
      %p41 = por %p39, %p40
      %p42 = scmp.ne.s32.totalorder %s28, %s29
      %p43 = scmp.eq.s32.totalorder %s21, 2
      %p44 = por %p42, %p43
      %p46 = scmp.ne.s32.totalorder %s29, %s45
      %p47 = scmp.eq.s32.totalorder %s21, 0
      %p48 = por %p46, %p47
      %s49 = ssub.s32 %s15, %s22
      %p50 = scmp.eq.s32.totalorder %s49, 0
      %s52 = sadd.s32 %s51, 1
      %s53 = scalar_select %p50, %s51, %s52
      %p56 = pneg %p50
      %p57 = scmp.eq.s32.totalorder %s15, 2
      %p58 = por %p56, %p57
      %p59 = scmp.ne.s32.totalorder %s51, %s54
      %p60 = scmp.eq.s32.totalorder %s15, 0
      %p61 = por %p59, %p60
      %p62 = scmp.ne.s32.totalorder %s51, %s54
      %p63 = scmp.eq.s32.totalorder %s20, 2
      %p64 = por %p62, %p63
      %p65 = scmp.ne.s32.totalorder %s54, %s55
      %p66 = scmp.eq.s32.totalorder %s20, 0
      %p67 = por %p65, %p66
      %p68 = scmp.ne.s32.totalorder %s54, %s55
      %p69 = scmp.eq.s32.totalorder %s21, 2
      %p70 = por %p68, %p69
      %p72 = scmp.ne.s32.totalorder %s55, %s71
      %p73 = scmp.eq.s32.totalorder %s21, 0
      %p74 = por %p72, %p73
      %s76 = sadd.s32 %s75, 1
      %p79 = scmp.eq.s32.totalorder %s15, 2
      %p80 = scmp.ne.s32.totalorder %s75, %s77
      %p81 = scmp.eq.s32.totalorder %s15, 0
      %p82 = por %p80, %p81
      %p83 = scmp.ne.s32.totalorder %s75, %s77
      %p84 = scmp.eq.s32.totalorder %s20, 2
      %p85 = por %p83, %p84
      %p86 = scmp.ne.s32.totalorder %s77, %s78
      %p87 = scmp.eq.s32.totalorder %s20, 0
      %p88 = por %p86, %p87
      %p89 = scmp.ne.s32.totalorder %s77, %s78
      %p90 = scmp.eq.s32.totalorder %s21, 2
      %p91 = por %p89, %p90
      %p93 = scmp.ne.s32.totalorder %s78, %s92
      %p94 = scmp.eq.s32.totalorder %s21, 0
      %p95 = por %p93, %p94
      %s97 = sadd.s32 %s96, 1
      %p100 = scmp.eq.s32.totalorder %s15, 2
      %p101 = scmp.ne.s32.totalorder %s96, %s98
      %p102 = scmp.eq.s32.totalorder %s15, 0
      %p103 = por %p101, %p102
      %p104 = scmp.ne.s32.totalorder %s96, %s98
      %p105 = scmp.eq.s32.totalorder %s20, 2
      %p106 = por %p104, %p105
      %p107 = scmp.ne.s32.totalorder %s98, %s99
      %p108 = scmp.eq.s32.totalorder %s20, 0
      %p109 = por %p107, %p108
      %p110 = scmp.ne.s32.totalorder %s98, %s99
      %p111 = scmp.eq.s32.totalorder %s21, 2
      %p112 = por %p110, %p111
      %p114 = scmp.ne.s32.totalorder %s99, %s113
      %p115 = scmp.eq.s32.totalorder %s21, 0
      %p116 = por %p114, %p115
      %s117 = ssub.s32 %s15, %s22
      %p118 = scmp.eq.s32.totalorder %s117, 0
      %s120 = sadd.s32 %s119, 1
      %s121 = scalar_select %p118, %s119, %s120
      %p124 = pneg %p118
      %p125 = scmp.eq.s32.totalorder %s15, 2
      %p126 = por %p124, %p125
      %p127 = scmp.ne.s32.totalorder %s119, %s122
      %p128 = scmp.eq.s32.totalorder %s15, 0
      %p129 = por %p127, %p128
      %p130 = scmp.ne.s32.totalorder %s119, %s122
      %p131 = scmp.eq.s32.totalorder %s20, 2
      %p132 = por %p130, %p131
      %p133 = scmp.ne.s32.totalorder %s122, %s123
      %p134 = scmp.eq.s32.totalorder %s20, 0
      %p135 = por %p133, %p134
      %p136 = scmp.ne.s32.totalorder %s122, %s123
      %p137 = scmp.eq.s32.totalorder %s21, 2
      %p138 = por %p136, %p137
      %p140 = scmp.ne.s32.totalorder %s123, %s139
      %p141 = scmp.eq.s32.totalorder %s21, 0
      %p142 = por %p140, %p141
      %s144 = sadd.s32 %s143, 1
      %p147 = scmp.eq.s32.totalorder %s15, 2
      %p148 = scmp.ne.s32.totalorder %s143, %s145
      %p149 = scmp.eq.s32.totalorder %s15, 0
      %p150 = por %p148, %p149
      %p151 = scmp.ne.s32.totalorder %s143, %s145
      %p152 = scmp.eq.s32.totalorder %s20, 2
      %p153 = por %p151, %p152
      %p154 = scmp.ne.s32.totalorder %s145, %s146
      %p155 = scmp.eq.s32.totalorder %s20, 0
      %p156 = por %p154, %p155
      %p157 = scmp.ne.s32.totalorder %s145, %s146
      %p158 = scmp.eq.s32.totalorder %s21, 2
      %p159 = por %p157, %p158
      %p161 = scmp.ne.s32.totalorder %s146, %s160
      %p162 = scmp.eq.s32.totalorder %s21, 0
      %p163 = por %p161, %p162
      %p164 = scmp.le.s32.totalorder 1, %s15
      %p165 = scmp.lt.s32.totalorder %s15, 4
      %p166 = pnand %p164, %p165
      %p167 = pneg %p166
      // Predicated region
      $region9: #{first_delay_sequence.1} parent=5 // pred_check
        _
      $region10: #{first_delay_sequence.1} parent=5 // pred_check_branch
        %169 = sbr.rel (%p166) target = $region12
      $region11: #{first_delay_sequence.1} parent=5 // pred_region
        %s170 = ssub.s32 %s15, 1
        // Predicated region
        $region13: #{first_delay_sequence.1} parent=11 // pred_check
          %p171 = pneg %p88
        $region14: #{first_delay_sequence.1} parent=11 // pred_check_branch
          %173 = sbr.rel (%p171) target = $region16
        $region15: #{first_delay_sequence.1} parent=11 // pred_region
          %s175 = ssub.s32 13952, 13952
          %176 = vsyncadd [#allocation9], %s175
          %s177 = sshll.u32 [#allocation8], 4
          %s178 = int_to_ptr.vmem [resolvable:$true] %s177
          %183 = dma.hbm_to_vmem [thread:$0]  %s3, 13952, %s178, [#allocation9], 128, 128, 8
        $region16: #{first_delay_sequence.1} parent=11 // pred_fallthru
          _
        // Predicated region
        $region17: #{first_delay_sequence.1} parent=11 // pred_check
          %p184 = pneg %p109
        $region18: #{first_delay_sequence.1} parent=11 // pred_check_branch
          %186 = sbr.rel (%p184) target = $region20
        $region19: #{first_delay_sequence.1} parent=11 // pred_region
          _
        $region20: #{first_delay_sequence.1} parent=11 // pred_fallthru
          _
      $region12: #{first_delay_sequence.1} parent=5 // pred_fallthru
        _
      %p187 = scmp.lt.s32.totalorder %s15, 3
      // Predicated region
      $region21: #{first_delay_sequence.1} parent=5 // pred_check
        %p188 = pneg %p187
      $region22: #{first_delay_sequence.1} parent=5 // pred_check_branch
        %190 = sbr.rel (%p188) target = $region24
      $region23: #{first_delay_sequence.1} parent=5 // pred_region
        // Predicated region
        $region25: #{first_delay_sequence.1} parent=23 // pred_check
          %p191 = pneg %p35
        $region26: #{first_delay_sequence.1} parent=23 // pred_check_branch
          %193 = sbr.rel (%p191) target = $region28
        $region27: #{first_delay_sequence.1} parent=23 // pred_region
          %s194 = smul.u32 2, %s15
          %p195 = scmp.lt.s32.totalorder %s194, 5
          %s196 = scalar_select %p195, %s194, 5
          %s197 = smul.addr %s196, 5
          %s198 = smul.addr %s197, 8
          %s199 = scalar_lea.vmem %s1, %s198
          %s200 = smul.u32 2, %s15
        $region28: #{first_delay_sequence.1} parent=23 // pred_fallthru
          _
        // Predicated region
        $region29: #{first_delay_sequence.1} parent=23 // pred_check
          %p201 = pneg %p61
        $region30: #{first_delay_sequence.1} parent=23 // pred_check_branch
          %203 = sbr.rel (%p201) target = $region32
        $region31: #{first_delay_sequence.1} parent=23 // pred_region
          %s204 = smul.u32 2, %s15
          %p205 = scmp.lt.s32.totalorder %s204, 5
          %s206 = scalar_select %p205, %s204, 5
          %s207 = smul.addr %s206, 8
          %s208 = scalar_lea.vmem %s2, %s207
          %s209 = smul.u32 2, %s15
        $region32: #{first_delay_sequence.1} parent=23 // pred_fallthru
          _
      $region24: #{first_delay_sequence.1} parent=5 // pred_fallthru
        _
      %p210 = scmp.le.s32.totalorder 1, %s15
      %p211 = scmp.lt.s32.totalorder %s15, 4
      %p212 = pnand %p210, %p211
      %p213 = pneg %p212
      // Predicated region
      $region33: #{first_delay_sequence.1} parent=5 // pred_check
        _
      $region34: #{first_delay_sequence.1} parent=5 // pred_check_branch
        %215 = sbr.rel (%p212) target = $region36
      $region35: #{first_delay_sequence.1} parent=5 // pred_region
        %s216 = ssub.s32 %s15, 1
        // Predicated region
        $region37: #{first_delay_sequence.1} parent=35 // pred_check
          %p217 = pneg %p88
        $region38: #{first_delay_sequence.1} parent=35 // pred_check_branch
          %219 = sbr.rel (%p217) target = $region40
        $region39: #{first_delay_sequence.1} parent=35 // pred_region
          %220 = dma.done [#allocation9], 13952
        $region40: #{first_delay_sequence.1} parent=35 // pred_fallthru
          _
        %s221 = smul.u32 2, %s20
        %p222 = scmp.lt.s32.totalorder %s221, 5
        %s223 = scalar_select %p222, %s221, 5
        %s224 = smul.addr %s223, 5
        %s225 = smul.addr %s224, 8
        %s226 = scalar_lea.vmem %s1, %s225
        %p227 = pneg %p41
        %p228 = pneg %p38
        %s229 = smul.u32 2, %s20
        %p230 = scmp.lt.s32.totalorder %s229, 5
        %s231 = scalar_select %p230, %s229, 5
        %s232 = smul.addr %s231, 8
        %s233 = scalar_lea.vmem %s2, %s232
        %p234 = pneg %p67
        %p235 = pneg %p64
        %p236 = pneg %p88
        %p237 = pneg %p85
        %p238 = pneg %p109
        %p239 = pneg %p106
        %p240 = pneg %p135
        %p241 = pneg %p132
        %s242 = smul.u32 2, %s20
        %p243 = scmp.lt.s32.totalorder %s242, 5
        %s244 = scalar_select %p243, %s242, 5
        %s245 = smul.addr %s244, 8
        %s246 = scalar_lea.vmem %s5, %s245
        %p247 = pneg %p156
        %p248 = pneg %p153
        %s249 = smul.u32 2, %s20
        %p250 = scmp.lt.s32.totalorder %s249, 5
        %s251 = scalar_select %p250, %s249, 5
        %s252 = smul.addr %s251, 5
        %s253 = smul.addr %s252, 8
        %s254 = scalar_lea.vmem %s1, %s253
        %s255 = smul.u32 2, %s20
        %s256 = smul.u32 2, %s20
        %p257 = scmp.lt.s32.totalorder %s256, 5
        %s258 = scalar_select %p257, %s256, 5
        %s259 = smul.addr %s258, 8
        %s260 = scalar_lea.vmem %s2, %s259
        %s261 = smul.u32 2, %s20
        %s262 = smul.u32 2, %s20
        %p263 = scmp.lt.s32.totalorder %s262, 5
        %s264 = scalar_select %p263, %s262, 5
        %s265 = smul.addr %s264, 8
        %s266 = scalar_lea.vmem %s5, %s265
        %s267 = smul.u32 2, %s20
        %p268 = scmp.eq.s32.totalorder %s20, 0
        // Predicated region
        $region41: #{first_delay_sequence.1} parent=35 // pred_check
          %p269 = pneg %p268
        $region42: #{first_delay_sequence.1} parent=35 // pred_check_branch
          %271 = sbr.rel (%p269) target = $region44
        $region43: #{first_delay_sequence.1} parent=35 // pred_region
          %v272 = vld [vmem:[%s4] sm:$0x1]
          %vm273 = vcmask 253952
          %274 = vst.msk [vmem:[#allocation2] sm:$0x1] %vm273, %v272
          %v275 = vld [vmem:[%s4] sm:$0x1]
          %v277 = vlaneseq
          %v278 = vshrl.u32 %v277, 7
          %v279 = vsub.s32 0, %v278
          %v280 = vrot.slane %v275, %v279
          %281 = vrot.lane.b32.xlu0 %v280, 96
          %v282 = vpop.permute.xlu0 %281
          %284 = vst.msk [vmem:[#allocation3] sm:$0x1] %vm273, %v282
        $region44: #{first_delay_sequence.1} parent=35 // pred_fallthru
          _
        %v285 = vld [vmem:[%s254] sm:$0xff]
        %v286 = vld [vmem:[%s254 + $0x8] sm:$0xff]
        %v287 = vld [vmem:[%s254 + $0x10] sm:$0xff]
        %v288 = vld [vmem:[%s254 + $0x18] sm:$0xff]
        %v289 = vld [vmem:[%s254 + $0x20] sm:$0xff]
        %v290 = vld [vmem:[%s254 + $0x28] sm:$0xff]
        %v291 = vld [vmem:[%s254 + $0x30] sm:$0xff]
        %v292 = vld [vmem:[%s254 + $0x38] sm:$0xff]
        %v293 = vld [vmem:[%s254 + $0x40] sm:$0xff]
        %v294 = vld [vmem:[%s254 + $0x48] sm:$0xff]
        %v295 = vld [vmem:[#allocation8 + $0x360] sm:$0xff]
        %v296 = vld [vmem:[#allocation8] sm:$0xff]
        %v297 = vld [vmem:[#allocation8 + $0x8] sm:$0xff]
        %v298 = vld [vmem:[#allocation8 + $0x10] sm:$0xff]
        %v299 = vld [vmem:[#allocation8 + $0x18] sm:$0xff]
        %v300 = vld [vmem:[#allocation8 + $0x20] sm:$0xff]
        %v301 = vld [vmem:[#allocation8 + $0x28] sm:$0xff]
        %v302 = vld [vmem:[#allocation8 + $0x30] sm:$0xff]
        %v303 = vld [vmem:[#allocation8 + $0x38] sm:$0xff]
        %v304 = vld [vmem:[#allocation8 + $0x40] sm:$0xff]
        %v305 = vld [vmem:[#allocation8 + $0x48] sm:$0xff]
        %v306 = vld [vmem:[#allocation8 + $0x50] sm:$0xff]
        %v307 = vld [vmem:[#allocation8 + $0x58] sm:$0xff]
        %v308 = vld [vmem:[#allocation8 + $0x60] sm:$0xff]
        %v309 = vld [vmem:[#allocation8 + $0x68] sm:$0xff]
        %v310 = vld [vmem:[#allocation8 + $0x70] sm:$0xff]
        %v311 = vld [vmem:[#allocation8 + $0x78] sm:$0xff]
        %v312 = vld [vmem:[#allocation8 + $0x80] sm:$0xff]
        %v313 = vld [vmem:[#allocation8 + $0x88] sm:$0xff]
        %v314 = vld [vmem:[#allocation8 + $0x90] sm:$0xff]
        %v315 = vld [vmem:[#allocation8 + $0x98] sm:$0xff]
        %v316 = vld [vmem:[#allocation8 + $0xa0] sm:$0xff]
        %v317 = vld [vmem:[#allocation8 + $0xa8] sm:$0xff]
        %v318 = vld [vmem:[#allocation8 + $0xb0] sm:$0xff]
        %v319 = vld [vmem:[#allocation8 + $0xb8] sm:$0xff]
        %v320 = vld [vmem:[#allocation8 + $0xc0] sm:$0xff]
        %v321 = vld [vmem:[#allocation8 + $0xc8] sm:$0xff]
        %v322 = vld [vmem:[#allocation8 + $0xd0] sm:$0xff]
        %v323 = vld [vmem:[#allocation8 + $0xd8] sm:$0xff]
        %v324 = vld [vmem:[#allocation8 + $0xe0] sm:$0xff]
        %v325 = vld [vmem:[#allocation8 + $0xe8] sm:$0xff]
        %v326 = vld [vmem:[#allocation8 + $0xf0] sm:$0xff]
        %v327 = vld [vmem:[#allocation8 + $0xf8] sm:$0xff]
        %v328 = vld [vmem:[#allocation8 + $0x100] sm:$0xff]
        %v329 = vld [vmem:[#allocation8 + $0x108] sm:$0xff]
        %v330 = vld [vmem:[#allocation8 + $0x110] sm:$0xff]
        %v331 = vld [vmem:[#allocation8 + $0x118] sm:$0xff]
        %v332 = vld [vmem:[#allocation8 + $0x120] sm:$0xff]
        %v333 = vld [vmem:[#allocation8 + $0x128] sm:$0xff]
        %v334 = vld [vmem:[#allocation8 + $0x130] sm:$0xff]
        %v335 = vld [vmem:[#allocation8 + $0x138] sm:$0xff]
        %v336 = vld [vmem:[#allocation8 + $0x140] sm:$0xff]
        %v337 = vld [vmem:[#allocation8 + $0x148] sm:$0xff]
        %v338 = vld [vmem:[#allocation8 + $0x150] sm:$0xff]
        %v339 = vld [vmem:[#allocation8 + $0x158] sm:$0xff]
        %v340 = vld [vmem:[#allocation8 + $0x160] sm:$0xff]
        %v341 = vld [vmem:[#allocation8 + $0x168] sm:$0xff]
        %v342 = vld [vmem:[#allocation8 + $0x170] sm:$0xff]
        %v343 = vld [vmem:[#allocation8 + $0x178] sm:$0xff]
        %v344 = vld [vmem:[#allocation8 + $0x180] sm:$0xff]
        %v345 = vld [vmem:[#allocation8 + $0x188] sm:$0xff]
        %v346 = vld [vmem:[#allocation8 + $0x190] sm:$0xff]
        %v347 = vld [vmem:[#allocation8 + $0x198] sm:$0xff]
        %v348 = vld [vmem:[#allocation8 + $0x1a0] sm:$0xff]
        %v349 = vld [vmem:[#allocation8 + $0x1a8] sm:$0xff]
        %v350 = vld [vmem:[#allocation8 + $0x1b0] sm:$0xff]
        %v351 = vld [vmem:[#allocation8 + $0x1b8] sm:$0xff]
        %v352 = vld [vmem:[#allocation8 + $0x1c0] sm:$0xff]
        %v353 = vld [vmem:[#allocation8 + $0x1c8] sm:$0xff]
        %v354 = vld [vmem:[#allocation8 + $0x1d0] sm:$0xff]
        %v355 = vld [vmem:[#allocation8 + $0x1d8] sm:$0xff]
        %v356 = vld [vmem:[#allocation8 + $0x1e0] sm:$0xff]
        %v357 = vld [vmem:[#allocation8 + $0x1e8] sm:$0xff]
        %v358 = vld [vmem:[#allocation8 + $0x1f0] sm:$0xff]
        %v359 = vld [vmem:[#allocation8 + $0x1f8] sm:$0xff]
        %v360 = vld [vmem:[#allocation8 + $0x200] sm:$0xff]
        %v361 = vld [vmem:[#allocation8 + $0x208] sm:$0xff]
        %v362 = vld [vmem:[#allocation8 + $0x210] sm:$0xff]
        %v363 = vld [vmem:[#allocation8 + $0x218] sm:$0xff]
        %v364 = vld [vmem:[#allocation8 + $0x220] sm:$0xff]
        %v365 = vld [vmem:[#allocation8 + $0x228] sm:$0xff]
        %v366 = vld [vmem:[#allocation8 + $0x230] sm:$0xff]
        %v367 = vld [vmem:[#allocation8 + $0x238] sm:$0xff]
        %v368 = vlaneseq
        %v369 = vshrl.u32 %v368, 7
        %v370 = vsub.s32 0, %v369
        %v371 = vrot.slane %v295, %v370
        %vm372 = vcmask 523264
        %v374 = vsel %vm372, %v289, 0
        %v377 = vsel %vm372, %v294, 0
        %379 = vmatprep.subr.mxu0 0.0
        %380 = vmatpush1.msra.mxu0 %v311
        %381 = vmatprep.subr.mxu0 0.0
        %382 = vmatpush1.msra.mxu0 %v310
        %383 = vmatprep.subr.mxu0 0.0
        %384 = vmatpush1.msra.mxu0 %v309
        %385 = vmatprep.subr.mxu0 0.0
        %386 = vmatpush1.msra.mxu0 %v308
        %387 = vmatprep.subr.mxu0 0.0
        %388 = vmatpush1.msra.mxu0 %v307
        %389 = vmatprep.subr.mxu0 0.0
        %390 = vmatpush1.msra.mxu0 %v306
        %391 = vmatprep.subr.mxu0 0.0
        %392 = vmatpush1.msra.mxu0 %v305
        %393 = vmatprep.subr.mxu0 0.0
        %394 = vmatpush1.msra.mxu0 %v304
        %395 = vmatprep.subr.mxu0 0.0
        %396 = vmatpush1.msra.mxu0 %v303
        %397 = vmatprep.subr.mxu0 0.0
        %398 = vmatpush1.msra.mxu0 %v302
        %399 = vmatprep.subr.mxu0 0.0
        %400 = vmatpush1.msra.mxu0 %v301
        %401 = vmatprep.subr.mxu0 0.0
        %402 = vmatpush1.msra.mxu0 %v300
        %403 = vmatprep.subr.mxu0 0.0
        %404 = vmatpush1.msra.mxu0 %v299
        %405 = vmatprep.subr.mxu0 0.0
        %406 = vmatpush1.msra.mxu0 %v298
        %407 = vmatprep.subr.mxu0 0.0
        %408 = vmatpush1.msra.mxu0 %v297
        %409 = vmatprep.subr.mxu0 0.0
        %410 = vmatpush1.msra.mxu0 %v296
        %411 = vmatprep.subr.mxu0 0.0
        %412 = vmatpush2.msra.mxu0 %v327
        %413 = vmatprep.subr.mxu0 0.0
        %414 = vmatpush2.msra.mxu0 %v326
        %415 = vmatprep.subr.mxu0 0.0
        %416 = vmatpush2.msra.mxu0 %v325
        %417 = vmatprep.subr.mxu0 0.0
        %418 = vmatpush2.msra.mxu0 %v324
        %419 = vmatprep.subr.mxu0 0.0
        %420 = vmatpush2.msra.mxu0 %v323
        %421 = vmatprep.subr.mxu0 0.0
        %422 = vmatpush2.msra.mxu0 %v322
        %423 = vmatprep.subr.mxu0 0.0
        %424 = vmatpush2.msra.mxu0 %v321
        %425 = vmatprep.subr.mxu0 0.0
        %426 = vmatpush2.msra.mxu0 %v320
        %427 = vmatprep.subr.mxu0 0.0
        %428 = vmatpush2.msra.mxu0 %v319
        %429 = vmatprep.subr.mxu0 0.0
        %430 = vmatpush2.msra.mxu0 %v318
        %431 = vmatprep.subr.mxu0 0.0
        %432 = vmatpush2.msra.mxu0 %v317
        %433 = vmatprep.subr.mxu0 0.0
        %434 = vmatpush2.msra.mxu0 %v316
        %435 = vmatprep.subr.mxu0 0.0
        %436 = vmatpush2.msra.mxu0 %v315
        %437 = vmatprep.subr.mxu0 0.0
        %438 = vmatpush2.msra.mxu0 %v314
        %439 = vmatprep.subr.mxu0 0.0
        %440 = vmatpush2.msra.mxu0 %v313
        %441 = vmatprep.subr.mxu0 0.0
        %442 = vmatpush2.msra.mxu0 %v312
        %443 = vmatprep.mubr.f32.mxu0 %v286
        %444 = vmatmul.mubr.f32.gmra.mxu0 %v285
        %v445 = vpop.f32.mrf.mxu0
        %v446 = vadd.f32 %v371, %v445
        %v447 = vpop.f32.mrf.mxu0
        %448 = vmatprep.mubr.f32.mxu0 %v291
        %449 = vmatmul.mubr.f32.gmra.mxu0 %v290
        %v450 = vpop.f32.mrf.mxu0
        %v451 = vadd.f32 %v371, %v450
        %v452 = vpop.f32.mrf.mxu0
        %453 = vdwg.mxu0
        %454 = vmatprep.subr.mxu0 0.0
        %455 = vmatpush1.msra.mxu0 %v343
        %456 = vmatprep.subr.mxu0 0.0
        %457 = vmatpush1.msra.mxu0 %v342
        %458 = vmatprep.subr.mxu0 0.0
        %459 = vmatpush1.msra.mxu0 %v341
        %460 = vmatprep.subr.mxu0 0.0
        %461 = vmatpush1.msra.mxu0 %v340
        %462 = vmatprep.subr.mxu0 0.0
        %463 = vmatpush1.msra.mxu0 %v339
        %464 = vmatprep.subr.mxu0 0.0
        %465 = vmatpush1.msra.mxu0 %v338
        %466 = vmatprep.subr.mxu0 0.0
        %467 = vmatpush1.msra.mxu0 %v337
        %468 = vmatprep.subr.mxu0 0.0
        %469 = vmatpush1.msra.mxu0 %v336
        %470 = vmatprep.subr.mxu0 0.0
        %471 = vmatpush1.msra.mxu0 %v335
        %472 = vmatprep.subr.mxu0 0.0
        %473 = vmatpush1.msra.mxu0 %v334
        %474 = vmatprep.subr.mxu0 0.0
        %475 = vmatpush1.msra.mxu0 %v333
        %476 = vmatprep.subr.mxu0 0.0
        %477 = vmatpush1.msra.mxu0 %v332
        %478 = vmatprep.subr.mxu0 0.0
        %479 = vmatpush1.msra.mxu0 %v331
        %480 = vmatprep.subr.mxu0 0.0
        %481 = vmatpush1.msra.mxu0 %v330
        %482 = vmatprep.subr.mxu0 0.0
        %483 = vmatpush1.msra.mxu0 %v329
        %484 = vmatprep.subr.mxu0 0.0
        %485 = vmatpush1.msra.mxu0 %v328
        %486 = vmatprep.subr.mxu0 0.0
        %487 = vmatpush2.msra.mxu0 %v359
        %488 = vmatprep.subr.mxu0 0.0
        %489 = vmatpush2.msra.mxu0 %v358
        %490 = vmatprep.subr.mxu0 0.0
        %491 = vmatpush2.msra.mxu0 %v357
        %492 = vmatprep.subr.mxu0 0.0
        %493 = vmatpush2.msra.mxu0 %v356
        %494 = vmatprep.subr.mxu0 0.0
        %495 = vmatpush2.msra.mxu0 %v355
        %496 = vmatprep.subr.mxu0 0.0
        %497 = vmatpush2.msra.mxu0 %v354
        %498 = vmatprep.subr.mxu0 0.0
        %499 = vmatpush2.msra.mxu0 %v353
        %500 = vmatprep.subr.mxu0 0.0
        %501 = vmatpush2.msra.mxu0 %v352
        %502 = vmatprep.subr.mxu0 0.0
        %503 = vmatpush2.msra.mxu0 %v351
        %504 = vmatprep.subr.mxu0 0.0
        %505 = vmatpush2.msra.mxu0 %v350
        %506 = vmatprep.subr.mxu0 0.0
        %507 = vmatpush2.msra.mxu0 %v349
        %508 = vmatprep.subr.mxu0 0.0
        %509 = vmatpush2.msra.mxu0 %v348
        %510 = vmatprep.subr.mxu0 0.0
        %511 = vmatpush2.msra.mxu0 %v347
        %512 = vmatprep.subr.mxu0 0.0
        %513 = vmatpush2.msra.mxu0 %v346
        %514 = vmatprep.subr.mxu0 0.0
        %515 = vmatpush2.msra.mxu0 %v345
        %516 = vmatprep.subr.mxu0 0.0
        %517 = vmatpush2.msra.mxu0 %v344
        %518 = vmatprep.mubr.f32.mxu0 %v288
        %519 = vmatmul.mubr.f32.gmra.mxu0 %v287
        %v520 = vpop.f32.mrf.mxu0
        %v521 = vadd.f32 %v446, %v520
        %v522 = vpop.f32.mrf.mxu0
        %523 = vmatprep.mubr.f32.mxu0 %v293
        %524 = vmatmul.mubr.f32.gmra.mxu0 %v292
        %v525 = vpop.f32.mrf.mxu0
        %v526 = vadd.f32 %v451, %v525
        %v527 = vpop.f32.mrf.mxu0
        %528 = vdwg.mxu0
        %529 = vmatprep.subr.mxu0 0.0
        %530 = vmatpush1.msra.mxu0 0.0
        %531 = vmatprep.subr.mxu0 0.0
        %532 = vmatpush1.msra.mxu0 0.0
        %533 = vmatprep.subr.mxu0 0.0
        %534 = vmatpush1.msra.mxu0 0.0
        %535 = vmatprep.subr.mxu0 0.0
        %536 = vmatpush1.msra.mxu0 0.0
        %537 = vmatprep.subr.mxu0 0.0
        %538 = vmatpush1.msra.mxu0 0.0
        %539 = vmatprep.subr.mxu0 0.0
        %540 = vmatpush1.msra.mxu0 0.0
        %541 = vmatprep.subr.mxu0 0.0
        %542 = vmatpush1.msra.mxu0 0.0
        %543 = vmatprep.subr.mxu0 0.0
        %544 = vmatpush1.msra.mxu0 0.0
        %545 = vmatprep.subr.mxu0 0.0
        %546 = vmatpush1.msra.mxu0 %v367
        %547 = vmatprep.subr.mxu0 0.0
        %548 = vmatpush1.msra.mxu0 %v366
        %549 = vmatprep.subr.mxu0 0.0
        %550 = vmatpush1.msra.mxu0 %v365
        %551 = vmatprep.subr.mxu0 0.0
        %552 = vmatpush1.msra.mxu0 %v364
        %553 = vmatprep.subr.mxu0 0.0
        %554 = vmatpush1.msra.mxu0 %v363
        %555 = vmatprep.subr.mxu0 0.0
        %556 = vmatpush1.msra.mxu0 %v362
        %557 = vmatprep.subr.mxu0 0.0
        %558 = vmatpush1.msra.mxu0 %v361
        %559 = vmatprep.subr.mxu0 0.0
        %560 = vmatpush1.msra.mxu0 %v360
        %561 = vmatprep.subr.mxu0 0.0
        %562 = vmatpush2.msra.mxu0 0.0
        %563 = vmatprep.subr.mxu0 0.0
        %564 = vmatpush2.msra.mxu0 0.0
        %565 = vmatprep.subr.mxu0 0.0
        %566 = vmatpush2.msra.mxu0 0.0
        %567 = vmatprep.subr.mxu0 0.0
        %568 = vmatpush2.msra.mxu0 0.0
        %569 = vmatprep.subr.mxu0 0.0
        %570 = vmatpush2.msra.mxu0 0.0
        %571 = vmatprep.subr.mxu0 0.0
        %572 = vmatpush2.msra.mxu0 0.0
        %573 = vmatprep.subr.mxu0 0.0
        %574 = vmatpush2.msra.mxu0 0.0
        %575 = vmatprep.subr.mxu0 0.0
        %576 = vmatpush2.msra.mxu0 0.0
        %577 = vmatprep.subr.mxu0 0.0
        %578 = vmatpush2.msra.mxu0 0.0
        %579 = vmatprep.subr.mxu0 0.0
        %580 = vmatpush2.msra.mxu0 0.0
        %581 = vmatprep.subr.mxu0 0.0
        %582 = vmatpush2.msra.mxu0 0.0
        %583 = vmatprep.subr.mxu0 0.0
        %584 = vmatpush2.msra.mxu0 0.0
        %585 = vmatprep.subr.mxu0 0.0
        %586 = vmatpush2.msra.mxu0 0.0
        %587 = vmatprep.subr.mxu0 0.0
        %588 = vmatpush2.msra.mxu0 0.0
        %589 = vmatprep.subr.mxu0 0.0
        %590 = vmatpush2.msra.mxu0 0.0
        %591 = vmatprep.subr.mxu0 0.0
        %592 = vmatpush2.msra.mxu0 0.0
        %593 = vmatprep.mubr.f32.mxu0 0.0
        %594 = vmatmul.mubr.f32.gmra.mxu0 %v374
        %v595 = vpop.f32.mrf.mxu0
        %v596 = vadd.f32 %v521, %v595
        %v597 = vpop.f32.mrf.mxu0
        %598 = vmatprep.mubr.f32.mxu0 0.0
        %599 = vmatmul.mubr.f32.gmra.mxu0 %v377
        %v600 = vpop.f32.mrf.mxu0
        %v601 = vadd.f32 %v526, %v600
        %v602 = vpop.f32.mrf.mxu0
        %603 = vdwg.mxu0
        %v604 = vmax.f32 %v596, 0.0
        %v605 = vmax.f32 %v601, 0.0
        %v606 = vld [vmem:[#allocation8 + $0x2c0] sm:$0xff]
        %v607 = vld [vmem:[#allocation8 + $0x2c8] sm:$0xff]
        %v608 = vld [vmem:[#allocation8 + $0x2d0] sm:$0xff]
        %v609 = vld [vmem:[#allocation8 + $0x2d8] sm:$0xff]
        %v610 = vld [vmem:[#allocation8 + $0x2e0] sm:$0xff]
        %v611 = vld [vmem:[#allocation8 + $0x2e8] sm:$0xff]
        %v612 = vld [vmem:[#allocation8 + $0x2f0] sm:$0xff]
        %v613 = vld [vmem:[#allocation8 + $0x2f8] sm:$0xff]
        %v614 = vld [vmem:[#allocation8 + $0x300] sm:$0xff]
        %v615 = vld [vmem:[#allocation8 + $0x308] sm:$0xff]
        %v616 = vld [vmem:[#allocation8 + $0x310] sm:$0xff]
        %v617 = vld [vmem:[#allocation8 + $0x318] sm:$0xff]
        %v618 = vld [vmem:[#allocation8 + $0x320] sm:$0xff]
        %v619 = vld [vmem:[#allocation8 + $0x328] sm:$0xff]
        %v620 = vld [vmem:[#allocation8 + $0x330] sm:$0xff]
        %v621 = vld [vmem:[#allocation8 + $0x338] sm:$0xff]
        %v622 = vlaneseq
        %v623 = vshrl.u32 %v622, 7
        %v624 = vsub.s32 2, %v623
        %v625 = vrot.slane %v295, %v624
        %626 = vmatprep.subr.mxu0 0.0
        %627 = vmatpush1.msra.mxu0 %v621
        %628 = vmatprep.subr.mxu0 0.0
        %629 = vmatpush1.msra.mxu0 %v620
        %630 = vmatprep.subr.mxu0 0.0
        %631 = vmatpush1.msra.mxu0 %v619
        %632 = vmatprep.subr.mxu0 0.0
        %633 = vmatpush1.msra.mxu0 %v618
        %634 = vmatprep.subr.mxu0 0.0
        %635 = vmatpush1.msra.mxu0 %v617
        %636 = vmatprep.subr.mxu0 0.0
        %637 = vmatpush1.msra.mxu0 %v616
        %638 = vmatprep.subr.mxu0 0.0
        %639 = vmatpush1.msra.mxu0 %v615
        %640 = vmatprep.subr.mxu0 0.0
        %641 = vmatpush1.msra.mxu0 %v614
        %642 = vmatprep.subr.mxu0 0.0
        %643 = vmatpush1.msra.mxu0 %v613
        %644 = vmatprep.subr.mxu0 0.0
        %645 = vmatpush1.msra.mxu0 %v612
        %646 = vmatprep.subr.mxu0 0.0
        %647 = vmatpush1.msra.mxu0 %v611
        %648 = vmatprep.subr.mxu0 0.0
        %649 = vmatpush1.msra.mxu0 %v610
        %650 = vmatprep.subr.mxu0 0.0
        %651 = vmatpush1.msra.mxu0 %v609
        %652 = vmatprep.subr.mxu0 0.0
        %653 = vmatpush1.msra.mxu0 %v608
        %654 = vmatprep.subr.mxu0 0.0
        %655 = vmatpush1.msra.mxu0 %v607
        %656 = vmatprep.subr.mxu0 0.0
        %657 = vmatpush1.msra.mxu0 %v606
        %658 = vmatprep.subr.mxu0 0.0
        %659 = vmatpush2.msra.mxu0 0.0
        %660 = vmatprep.subr.mxu0 0.0
        %661 = vmatpush2.msra.mxu0 0.0
        %662 = vmatprep.subr.mxu0 0.0
        %663 = vmatpush2.msra.mxu0 0.0
        %664 = vmatprep.subr.mxu0 0.0
        %665 = vmatpush2.msra.mxu0 0.0
        %666 = vmatprep.subr.mxu0 0.0
        %667 = vmatpush2.msra.mxu0 0.0
        %668 = vmatprep.subr.mxu0 0.0
        %669 = vmatpush2.msra.mxu0 0.0
        %670 = vmatprep.subr.mxu0 0.0
        %671 = vmatpush2.msra.mxu0 0.0
        %672 = vmatprep.subr.mxu0 0.0
        %673 = vmatpush2.msra.mxu0 0.0
        %674 = vmatprep.subr.mxu0 0.0
        %675 = vmatpush2.msra.mxu0 0.0
        %676 = vmatprep.subr.mxu0 0.0
        %677 = vmatpush2.msra.mxu0 0.0
        %678 = vmatprep.subr.mxu0 0.0
        %679 = vmatpush2.msra.mxu0 0.0
        %680 = vmatprep.subr.mxu0 0.0
        %681 = vmatpush2.msra.mxu0 0.0
        %682 = vmatprep.subr.mxu0 0.0
        %683 = vmatpush2.msra.mxu0 0.0
        %684 = vmatprep.subr.mxu0 0.0
        %685 = vmatpush2.msra.mxu0 0.0
        %686 = vmatprep.subr.mxu0 0.0
        %687 = vmatpush2.msra.mxu0 0.0
        %688 = vmatprep.subr.mxu0 0.0
        %689 = vmatpush2.msra.mxu0 0.0
        %690 = vmatprep.mubr.f32.mxu0 0.0
        %691 = vmatmul.mubr.f32.gmra.mxu0 %v604
        %v692 = vpop.f32.mrf.mxu0
        %v693 = vadd.f32 %v625, %v692
        %v694 = vpop.f32.mrf.mxu0
        %695 = vmatprep.mubr.f32.mxu0 0.0
        %696 = vmatmul.mubr.f32.gmra.mxu0 %v605
        %v697 = vpop.f32.mrf.mxu0
        %v698 = vadd.f32 %v625, %v697
        %v699 = vpop.f32.mrf.mxu0
        %700 = vdwg.mxu0
        %703 = vrot.lane.b32.xlu0 %v693, 127
        %v704 = vpop.permute.xlu0 %703
        %705 = vrot.lane.b32.xlu0 %v698, 127
        %v706 = vpop.permute.xlu0 %705
        %v709 = vmin.f32 %v693, %v704
        %v710 = vmin.f32 %v698, %v706
        %v711 = vxor.u32 %v709, 2147483648
        %v712 = vxor.u32 %v710, 2147483648
        %v713 = vmul.f32 %v711, 1.442695
        %v714 = vpow.pop %v713
        %v715 = vmul.f32 %v712, 1.442695
        %v716 = vpow.pop %v715
        %v717 = vadd.f32 %v714, 1.0
        %v718 = vadd.f32 %v716, 1.0
        %v719 = vrcp.pop %v717
        %v720 = vmul.f32 1.0, %v719
        %v721 = vrcp.pop %v718
        %v722 = vmul.f32 1.0, %v721
        %v723 = vld [vmem:[#allocation8 + $0x240] sm:$0xff]
        %v724 = vld [vmem:[#allocation8 + $0x248] sm:$0xff]
        %v725 = vld [vmem:[#allocation8 + $0x250] sm:$0xff]
        %v726 = vld [vmem:[#allocation8 + $0x258] sm:$0xff]
        %v727 = vld [vmem:[#allocation8 + $0x260] sm:$0xff]
        %v728 = vld [vmem:[#allocation8 + $0x268] sm:$0xff]
        %v729 = vld [vmem:[#allocation8 + $0x270] sm:$0xff]
        %v730 = vld [vmem:[#allocation8 + $0x278] sm:$0xff]
        %v731 = vld [vmem:[#allocation8 + $0x280] sm:$0xff]
        %v732 = vld [vmem:[#allocation8 + $0x288] sm:$0xff]
        %v733 = vld [vmem:[#allocation8 + $0x290] sm:$0xff]
        %v734 = vld [vmem:[#allocation8 + $0x298] sm:$0xff]
        %v735 = vld [vmem:[#allocation8 + $0x2a0] sm:$0xff]
        %v736 = vld [vmem:[#allocation8 + $0x2a8] sm:$0xff]
        %v737 = vld [vmem:[#allocation8 + $0x2b0] sm:$0xff]
        %v738 = vld [vmem:[#allocation8 + $0x2b8] sm:$0xff]
        %v739 = vlaneseq
        %v740 = vshrl.u32 %v739, 7
        %v741 = vsub.s32 1, %v740
        %v742 = vrot.slane %v295, %v741
        %743 = vmatprep.subr.mxu0 0.0
        %744 = vmatpush1.msra.mxu0 %v738
        %745 = vmatprep.subr.mxu0 0.0
        %746 = vmatpush1.msra.mxu0 %v737
        %747 = vmatprep.subr.mxu0 0.0
        %748 = vmatpush1.msra.mxu0 %v736
        %749 = vmatprep.subr.mxu0 0.0
        %750 = vmatpush1.msra.mxu0 %v735
        %751 = vmatprep.subr.mxu0 0.0
        %752 = vmatpush1.msra.mxu0 %v734
        %753 = vmatprep.subr.mxu0 0.0
        %754 = vmatpush1.msra.mxu0 %v733
        %755 = vmatprep.subr.mxu0 0.0
        %756 = vmatpush1.msra.mxu0 %v732
        %757 = vmatprep.subr.mxu0 0.0
        %758 = vmatpush1.msra.mxu0 %v731
        %759 = vmatprep.subr.mxu0 0.0
        %760 = vmatpush1.msra.mxu0 %v730
        %761 = vmatprep.subr.mxu0 0.0
        %762 = vmatpush1.msra.mxu0 %v729
        %763 = vmatprep.subr.mxu0 0.0
        %764 = vmatpush1.msra.mxu0 %v728
        %765 = vmatprep.subr.mxu0 0.0
        %766 = vmatpush1.msra.mxu0 %v727
        %767 = vmatprep.subr.mxu0 0.0
        %768 = vmatpush1.msra.mxu0 %v726
        %769 = vmatprep.subr.mxu0 0.0
        %770 = vmatpush1.msra.mxu0 %v725
        %771 = vmatprep.subr.mxu0 0.0
        %772 = vmatpush1.msra.mxu0 %v724
        %773 = vmatprep.subr.mxu0 0.0
        %774 = vmatpush1.msra.mxu0 %v723
        %775 = vmatprep.subr.mxu0 0.0
        %776 = vmatpush2.msra.mxu0 0.0
        %777 = vmatprep.subr.mxu0 0.0
        %778 = vmatpush2.msra.mxu0 0.0
        %779 = vmatprep.subr.mxu0 0.0
        %780 = vmatpush2.msra.mxu0 0.0
        %781 = vmatprep.subr.mxu0 0.0
        %782 = vmatpush2.msra.mxu0 0.0
        %783 = vmatprep.subr.mxu0 0.0
        %784 = vmatpush2.msra.mxu0 0.0
        %785 = vmatprep.subr.mxu0 0.0
        %786 = vmatpush2.msra.mxu0 0.0
        %787 = vmatprep.subr.mxu0 0.0
        %788 = vmatpush2.msra.mxu0 0.0
        %789 = vmatprep.subr.mxu0 0.0
        %790 = vmatpush2.msra.mxu0 0.0
        %791 = vmatprep.subr.mxu0 0.0
        %792 = vmatpush2.msra.mxu0 0.0
        %793 = vmatprep.subr.mxu0 0.0
        %794 = vmatpush2.msra.mxu0 0.0
        %795 = vmatprep.subr.mxu0 0.0
        %796 = vmatpush2.msra.mxu0 0.0
        %797 = vmatprep.subr.mxu0 0.0
        %798 = vmatpush2.msra.mxu0 0.0
        %799 = vmatprep.subr.mxu0 0.0
        %800 = vmatpush2.msra.mxu0 0.0
        %801 = vmatprep.subr.mxu0 0.0
        %802 = vmatpush2.msra.mxu0 0.0
        %803 = vmatprep.subr.mxu0 0.0
        %804 = vmatpush2.msra.mxu0 0.0
        %805 = vmatprep.subr.mxu0 0.0
        %806 = vmatpush2.msra.mxu0 0.0
        %807 = vmatprep.mubr.f32.mxu0 0.0
        %808 = vmatmul.mubr.f32.gmra.mxu0 %v604
        %v809 = vpop.f32.mrf.mxu0
        %v810 = vadd.f32 %v742, %v809
        %v811 = vpop.f32.mrf.mxu0
        %812 = vmatprep.mubr.f32.mxu0 0.0
        %813 = vmatmul.mubr.f32.gmra.mxu0 %v605
        %v814 = vpop.f32.mrf.mxu0
        %v815 = vadd.f32 %v742, %v814
        %v816 = vpop.f32.mrf.mxu0
        %817 = vdwg.mxu0
        %818 = vst [vmem:[#allocation5] sm:$0xff] %v810
        %819 = vst [vmem:[#allocation5 + $0x8] sm:$0xff] %v815
        %v820 = vld [vmem:[#allocation8 + $0x2a0] sm:$0xff]
        %v821 = vld [vmem:[#allocation8 + $0x2a8] sm:$0xff]
        %v822 = vld [vmem:[#allocation8 + $0x2b0] sm:$0xff]
        %v823 = vld [vmem:[#allocation8 + $0x2b8] sm:$0xff]
        %s824 = sld [smem:[#allocation7]]
        %s825 = smul.u32 %s20, 16
        %v826 = vld [vmem:[#allocation2] sm:$0x1]
        %v827 = vld [vmem:[#allocation3] sm:$0x1]
        loop: start=0, step=1, limit=16
        $region45: #{first_delay_sequence.1} parent=35 // loop_pre_header
          _
        $region46: #{first_delay_sequence.1} parent=35 // loop_header
          %s829 = sphi 0, %s833
          %p830 = scmp.ge.s32.totalorder %s829, 16
          %v834 = vphi %v826, %v960
          %v835 = vphi %v827, %v964
        $region47: #{first_delay_sequence.1} parent=35 // loop_header_branch
          %832 = sbr.rel (%p830) target = $region51
        $region48: #{first_delay_sequence.1} parent=35 // loop_body
          %s836 = scalar_lea.vmem [#allocation5], %s829
          %v837 = vld [vmem:[%s836] sm:$0x1]
          %vm838 = vcmask 261120
          %v840 = vsel %vm838, %v834, 0
          %842 = vmatprep.subr.mxu0 0.0
          %843 = vmatpush1.msra.mxu0 0.0
          %844 = vmatprep.subr.mxu0 0.0
          %845 = vmatpush1.msra.mxu0 0.0
          %846 = vmatprep.subr.mxu0 0.0
          %847 = vmatpush1.msra.mxu0 0.0
          %848 = vmatprep.subr.mxu0 0.0
          %849 = vmatpush1.msra.mxu0 0.0
          %850 = vmatprep.subr.mxu0 0.0
          %851 = vmatpush1.msra.mxu0 0.0
          %852 = vmatprep.subr.mxu0 0.0
          %853 = vmatpush1.msra.mxu0 0.0
          %854 = vmatprep.subr.mxu0 0.0
          %855 = vmatpush1.msra.mxu0 0.0
          %856 = vmatprep.subr.mxu0 0.0
          %857 = vmatpush1.msra.mxu0 0.0
          %858 = vmatprep.subr.mxu0 0.0
          %859 = vmatpush1.msra.mxu0 0.0
          %860 = vmatprep.subr.mxu0 0.0
          %861 = vmatpush1.msra.mxu0 0.0
          %862 = vmatprep.subr.mxu0 0.0
          %863 = vmatpush1.msra.mxu0 0.0
          %864 = vmatprep.subr.mxu0 0.0
          %865 = vmatpush1.msra.mxu0 0.0
          %866 = vmatprep.subr.mxu0 0.0
          %867 = vmatpush1.msra.mxu0 %v823
          %868 = vmatprep.subr.mxu0 0.0
          %869 = vmatpush1.msra.mxu0 %v822
          %870 = vmatprep.subr.mxu0 0.0
          %871 = vmatpush1.msra.mxu0 %v821
          %872 = vmatprep.subr.mxu0 0.0
          %873 = vmatpush1.msra.mxu0 %v820
          %874 = vmatprep.subr.mxu0 0.0
          %875 = vmatpush2.msra.mxu0 0.0
          %876 = vmatprep.subr.mxu0 0.0
          %877 = vmatpush2.msra.mxu0 0.0
          %878 = vmatprep.subr.mxu0 0.0
          %879 = vmatpush2.msra.mxu0 0.0
          %880 = vmatprep.subr.mxu0 0.0
          %881 = vmatpush2.msra.mxu0 0.0
          %882 = vmatprep.subr.mxu0 0.0
          %883 = vmatpush2.msra.mxu0 0.0
          %884 = vmatprep.subr.mxu0 0.0
          %885 = vmatpush2.msra.mxu0 0.0
          %886 = vmatprep.subr.mxu0 0.0
          %887 = vmatpush2.msra.mxu0 0.0
          %888 = vmatprep.subr.mxu0 0.0
          %889 = vmatpush2.msra.mxu0 0.0
          %890 = vmatprep.subr.mxu0 0.0
          %891 = vmatpush2.msra.mxu0 0.0
          %892 = vmatprep.subr.mxu0 0.0
          %893 = vmatpush2.msra.mxu0 0.0
          %894 = vmatprep.subr.mxu0 0.0
          %895 = vmatpush2.msra.mxu0 0.0
          %896 = vmatprep.subr.mxu0 0.0
          %897 = vmatpush2.msra.mxu0 0.0
          %898 = vmatprep.subr.mxu0 0.0
          %899 = vmatpush2.msra.mxu0 0.0
          %900 = vmatprep.subr.mxu0 0.0
          %901 = vmatpush2.msra.mxu0 0.0
          %902 = vmatprep.subr.mxu0 0.0
          %903 = vmatpush2.msra.mxu0 0.0
          %904 = vmatprep.subr.mxu0 0.0
          %905 = vmatpush2.msra.mxu0 0.0
          %906 = vmatprep.mubr.f32.mxu0 0.0
          %907 = vmatmul.mubr.f32.gmra.mxu0 %v840
          %v908 = vpop.f32.mrf.mxu0
          %v909 = vadd.f32 0.0, %v908
          %v910 = vpop.f32.mrf.mxu0
          %911 = vdwg.mxu0
          %v912 = vadd.f32 %v837, %v909
          %v913 = vxor.u32 %v912, 2147483648
          %v914 = vmul.f32 %v913, 1.442695
          %v915 = vpow.pop %v914
          %v916 = vadd.f32 %v915, 1.0
          %v917 = vrcp.pop %v916
          %v918 = vmul.f32 1.0, %v917
          %v919 = vtanh.pop %v912
          %921 = vrot.lane.b32.xlu0 %v835, 32
          %v922 = vpop.permute.xlu0 %921
          %v924 = vmul.f32 %v918, %v922
          %926 = vrot.lane.b32.xlu0 %v919, 64
          %v927 = vpop.permute.xlu0 %926
          %v929 = vmul.f32 %v918, %v927
          %931 = vrot.lane.b32.xlu0 %v929, 32
          %v932 = vpop.permute.xlu0 %931
          %v934 = vadd.f32 %v924, %v932
          %v935 = vtanh.pop %v934
          %937 = vrot.lane.b32.xlu0 %v935, 64
          %v938 = vpop.permute.xlu0 %937
          %v940 = vmul.f32 %v918, %v938
          %942 = vrot.lane.b32.xlu0 %v940, 32
          %v943 = vpop.permute.xlu0 %942
          %s945 = scalar_lea.vmem [#allocation4], %s829
          %vm946 = vcmask 253952
          %947 = vst.msk [vmem:[%s945] sm:$0x1] %vm946, %v943
          %s948 = sadd.s32 %s825, %s829
          %p949 = scmp.lt.s32.totalorder %s948, %s824
          %s950 = scalar_select %p949, 1, 0
          %v951 = vstv %s950
          %vm952 = vcmp.eq.s32.totalorder %v951, 1
          %953 = vrot.lane.b32.xlu0 %v834, 96
          %v954 = vpop.permute.xlu0 %953
          %v956 = vsel %vm952, %v940, %v954
          %v957 = vsel %vm952, %v934, %v922
          %959 = vrot.lane.b32.xlu0 %v956, 32
          %v960 = vpop.permute.xlu0 %959
          %963 = vrot.lane.b32.xlu0 %v957, 96
          %v964 = vpop.permute.xlu0 %963
        $region49: #{first_delay_sequence.1} parent=35 // loop_footer
          %s833 = sadd.s32 1, %s829
        $region50: #{first_delay_sequence.1} parent=35 // loop_footer_branch
          %828 = sbr.rel target = $region46
        $region51: #{first_delay_sequence.1} parent=35 // loop_exit
          _
        %vm966 = vcmask 253952
        %967 = vst.msk [vmem:[#allocation2] sm:$0x1] %vm966, %v834
        %968 = vst.msk [vmem:[#allocation3] sm:$0x1] %vm966, %v835
        %v969 = vld [vmem:[#allocation4] sm:$0xff]
        %v970 = vld [vmem:[#allocation4 + $0x8] sm:$0xff]
        %v971 = vld [vmem:[#allocation8 + $0x340] sm:$0xff]
        %v972 = vld [vmem:[#allocation8 + $0x348] sm:$0xff]
        %v973 = vld [vmem:[#allocation8 + $0x350] sm:$0xff]
        %v974 = vld [vmem:[#allocation8 + $0x358] sm:$0xff]
        %vm975 = vcmask 261120
        %v977 = vsel %vm975, %v969, 0
        %v980 = vsel %vm975, %v970, 0
        %982 = vmatprep.subr.mxu0 0.0
        %983 = vmatpush1.msra.mxu0 0.0
        %984 = vmatprep.subr.mxu0 0.0
        %985 = vmatpush1.msra.mxu0 0.0
        %986 = vmatprep.subr.mxu0 0.0
        %987 = vmatpush1.msra.mxu0 0.0
        %988 = vmatprep.subr.mxu0 0.0
        %989 = vmatpush1.msra.mxu0 0.0
        %990 = vmatprep.subr.mxu0 0.0
        %991 = vmatpush1.msra.mxu0 0.0
        %992 = vmatprep.subr.mxu0 0.0
        %993 = vmatpush1.msra.mxu0 0.0
        %994 = vmatprep.subr.mxu0 0.0
        %995 = vmatpush1.msra.mxu0 0.0
        %996 = vmatprep.subr.mxu0 0.0
        %997 = vmatpush1.msra.mxu0 0.0
        %998 = vmatprep.subr.mxu0 0.0
        %999 = vmatpush1.msra.mxu0 0.0
        %1000 = vmatprep.subr.mxu0 0.0
        %1001 = vmatpush1.msra.mxu0 0.0
        %1002 = vmatprep.subr.mxu0 0.0
        %1003 = vmatpush1.msra.mxu0 0.0
        %1004 = vmatprep.subr.mxu0 0.0
        %1005 = vmatpush1.msra.mxu0 0.0
        %1006 = vmatprep.subr.mxu0 0.0
        %1007 = vmatpush1.msra.mxu0 %v974
        %1008 = vmatprep.subr.mxu0 0.0
        %1009 = vmatpush1.msra.mxu0 %v973
        %1010 = vmatprep.subr.mxu0 0.0
        %1011 = vmatpush1.msra.mxu0 %v972
        %1012 = vmatprep.subr.mxu0 0.0
        %1013 = vmatpush1.msra.mxu0 %v971
        %1014 = vmatprep.subr.mxu0 0.0
        %1015 = vmatpush2.msra.mxu0 0.0
        %1016 = vmatprep.subr.mxu0 0.0
        %1017 = vmatpush2.msra.mxu0 0.0
        %1018 = vmatprep.subr.mxu0 0.0
        %1019 = vmatpush2.msra.mxu0 0.0
        %1020 = vmatprep.subr.mxu0 0.0
        %1021 = vmatpush2.msra.mxu0 0.0
        %1022 = vmatprep.subr.mxu0 0.0
        %1023 = vmatpush2.msra.mxu0 0.0
        %1024 = vmatprep.subr.mxu0 0.0
        %1025 = vmatpush2.msra.mxu0 0.0
        %1026 = vmatprep.subr.mxu0 0.0
        %1027 = vmatpush2.msra.mxu0 0.0
        %1028 = vmatprep.subr.mxu0 0.0
        %1029 = vmatpush2.msra.mxu0 0.0
        %1030 = vmatprep.subr.mxu0 0.0
        %1031 = vmatpush2.msra.mxu0 0.0
        %1032 = vmatprep.subr.mxu0 0.0
        %1033 = vmatpush2.msra.mxu0 0.0
        %1034 = vmatprep.subr.mxu0 0.0
        %1035 = vmatpush2.msra.mxu0 0.0
        %1036 = vmatprep.subr.mxu0 0.0
        %1037 = vmatpush2.msra.mxu0 0.0
        %1038 = vmatprep.subr.mxu0 0.0
        %1039 = vmatpush2.msra.mxu0 0.0
        %1040 = vmatprep.subr.mxu0 0.0
        %1041 = vmatpush2.msra.mxu0 0.0
        %1042 = vmatprep.subr.mxu0 0.0
        %1043 = vmatpush2.msra.mxu0 0.0
        %1044 = vmatprep.subr.mxu0 0.0
        %1045 = vmatpush2.msra.mxu0 0.0
        %1046 = vmatprep.mubr.f32.mxu0 0.0
        %1047 = vmatmul.mubr.f32.gmra.mxu0 %v977
        %v1048 = vpop.f32.mrf.mxu0
        %v1049 = vadd.f32 %v625, %v1048
        %v1050 = vpop.f32.mrf.mxu0
        %1051 = vmatprep.mubr.f32.mxu0 0.0
        %1052 = vmatmul.mubr.f32.gmra.mxu0 %v980
        %v1053 = vpop.f32.mrf.mxu0
        %v1054 = vadd.f32 %v625, %v1053
        %v1055 = vpop.f32.mrf.mxu0
        %1056 = vdwg.mxu0
        %v1057 = vxor.u32 %v1049, 2147483648
        %v1058 = vxor.u32 %v1054, 2147483648
        %v1059 = vmul.f32 %v1057, 1.442695
        %v1060 = vpow.pop %v1059
        %v1061 = vmul.f32 %v1058, 1.442695
        %v1062 = vpow.pop %v1061
        %v1063 = vadd.f32 %v1060, 1.0
        %v1064 = vadd.f32 %v1062, 1.0
        %v1065 = vrcp.pop %v1063
        %v1066 = vmul.f32 1.0, %v1065
        %v1067 = vrcp.pop %v1064
        %v1068 = vmul.f32 1.0, %v1067
        %v1069 = vld [vmem:[%s260] sm:$0xff]
        %v1070 = vld [vmem:[%s260 + $0x8] sm:$0xff]
        %v1071 = vmul.f32 %v720, %v1069
        %v1072 = vmul.f32 %v722, %v1070
        %v1073 = vsub.f32 1.0, %v720
        %v1074 = vsub.f32 1.0, %v722
        %1077 = vrot.lane.b32.xlu0 %v1066, 126
        %v1078 = vpop.permute.xlu0 %1077
        %1079 = vrot.lane.b32.xlu0 %v1068, 126
        %v1080 = vpop.permute.xlu0 %1079
        %v1083 = vmul.f32 %v1073, %v1078
        %v1084 = vmul.f32 %v1074, %v1080
        %v1085 = vadd.f32 %v1071, %v1083
        %v1086 = vadd.f32 %v1072, %v1084
        %v1087 = vmul.f32 %v1085, %v720
        %v1088 = vmul.f32 %v1086, %v722
        %v1089 = vsub.f32 1.0, %v1085
        %v1090 = vsub.f32 1.0, %v1086
        %1093 = vrot.lane.b32.xlu0 %v1069, 127
        %v1094 = vpop.permute.xlu0 %1093
        %1095 = vrot.lane.b32.xlu0 %v1070, 127
        %v1096 = vpop.permute.xlu0 %1095
        %v1099 = vmul.f32 %v1089, %v1094
        %v1100 = vmul.f32 %v1090, %v1096
        %v1101 = vadd.f32 %v1087, %v1099
        %v1102 = vadd.f32 %v1088, %v1100
        %vm1103 = vcmp.lt.f32.partialorder %v720, 0.5
        %vm1104 = vcmp.lt.f32.partialorder %v722, 0.5
        %v1105 = vsel %vm1103, 0.0, %v1101
        %v1106 = vsel %vm1104, 0.0, %v1102
        %1107 = vst [vmem:[%s266] sm:$0xff] 0.0
        %1108 = vst [vmem:[%s266 + $0x8] sm:$0xff] 0.0
        %vm1109 = vcmask 7168
        %1110 = vst.msk [vmem:[%s266] sm:$0xff] %vm1109, %v1105
        %1111 = vst.msk [vmem:[%s266 + $0x8] sm:$0xff] %vm1109, %v1106
        %1114 = vrot.lane.b32.xlu0 %v1085, 1
        %v1115 = vpop.permute.xlu0 %1114
        %1116 = vrot.lane.b32.xlu0 %v1086, 1
        %v1117 = vpop.permute.xlu0 %1116
        %vm1120 = vcmask 15368
        %1121 = vst.msk [vmem:[%s266] sm:$0xff] %vm1120, %v1115
        %1122 = vst.msk [vmem:[%s266 + $0x8] sm:$0xff] %vm1120, %v1117
        %1125 = vrot.lane.b32.xlu0 %v720, 2
        %v1126 = vpop.permute.xlu0 %1125
        %1127 = vrot.lane.b32.xlu0 %v722, 2
        %v1128 = vpop.permute.xlu0 %1127
        %vm1131 = vcmask 23568
        %1132 = vst.msk [vmem:[%s266] sm:$0xff] %vm1131, %v1126
        %1133 = vst.msk [vmem:[%s266 + $0x8] sm:$0xff] %vm1131, %v1128
        %1134 = vst [vmem:[%s6] sm:$0x1] 0.0
        %1135 = vst.msk [vmem:[%s6] sm:$0x1] %vm966, %v834
        %1137 = vrot.lane.b32.xlu0 %v835, 32
        %v1138 = vpop.permute.xlu0 %1137
        %vm1140 = vcmask 516352
        %1141 = vst.msk [vmem:[%s6] sm:$0x1] %vm1140, %v1138
        %s1142 = smul.u32 2, %s20
        %p1143 = scmp.lt.s32.totalorder %s1142, 5
        %s1144 = scalar_select %p1143, %s1142, 5
        %s1145 = smul.addr %s1144, 8
        %s1146 = scalar_lea.vmem %s5, %s1145
        // Predicated region
        $region52: #{first_delay_sequence.1} parent=35 // pred_check
          %p1147 = pneg %p132
        $region53: #{first_delay_sequence.1} parent=35 // pred_check_branch
          %1149 = sbr.rel (%p1147) target = $region55
        $region54: #{first_delay_sequence.1} parent=35 // pred_region
          %s1150 = smul.u32 2, %s20
        $region55: #{first_delay_sequence.1} parent=35 // pred_fallthru
          _
        // Predicated region
        $region56: #{first_delay_sequence.1} parent=35 // pred_check
          %p1151 = pneg %p153
        $region57: #{first_delay_sequence.1} parent=35 // pred_check_branch
          %1153 = sbr.rel (%p1151) target = $region59
        $region58: #{first_delay_sequence.1} parent=35 // pred_region
          _
        $region59: #{first_delay_sequence.1} parent=35 // pred_fallthru
          _
        // Predicated region
        $region60: #{first_delay_sequence.1} parent=35 // pred_check
          %p1154 = pneg %p153
        $region61: #{first_delay_sequence.1} parent=35 // pred_check_branch
          %1156 = sbr.rel (%p1154) target = $region63
        $region62: #{first_delay_sequence.1} parent=35 // pred_region
          _
        $region63: #{first_delay_sequence.1} parent=35 // pred_fallthru
          _
      $region36: #{first_delay_sequence.1} parent=5 // pred_fallthru
        _
      %p1157 = scmp.le.s32.totalorder 2, %s15
      // Predicated region
      $region64: #{first_delay_sequence.1} parent=5 // pred_check
        %p1158 = pneg %p1157
      $region65: #{first_delay_sequence.1} parent=5 // pred_check_branch
        %1160 = sbr.rel (%p1158) target = $region67
      $region66: #{first_delay_sequence.1} parent=5 // pred_region
        %s1161 = ssub.s32 %s15, 2
        // Predicated region
        $region68: #{first_delay_sequence.1} parent=66 // pred_check
          %p1162 = pneg %p138
        $region69: #{first_delay_sequence.1} parent=66 // pred_check_branch
          %1164 = sbr.rel (%p1162) target = $region71
        $region70: #{first_delay_sequence.1} parent=66 // pred_region
          %s1165 = smul.u32 2, %s21
          %p1166 = scmp.lt.s32.totalorder %s1165, 5
          %s1167 = scalar_select %p1166, %s1165, 5
          %s1168 = smul.addr %s1167, 8
          %s1169 = scalar_lea.vmem %s5, %s1168
        $region71: #{first_delay_sequence.1} parent=66 // pred_fallthru
          _
      $region67: #{first_delay_sequence.1} parent=5 // pred_fallthru
        _
    $region6: #{first_delay_sequence.1} parent=1 // loop_footer
      %s19 = sadd.s32 1, %s15
    $region7: #{first_delay_sequence.1} parent=1 // loop_footer_branch
      %14 = sbr.rel target = $region3
    $region8: #{first_delay_sequence.1} parent=1 // loop_exit
      _
    %1170 = vsyncpa [#allocation9], 1
    %s1171 = scalar_lea.sflag [#allocation9], 1
    %1172 = vsyncpa %s1171, 1

</llo_original>
